<compile_context>
chip_gen: v7x
topology: tpu7x:2x2x1
jax: 0.10.0
libtpu: 0.0.40
codegen_flags: <defaults>
</compile_context>

<pallas_src>
import functools

import numpy as np
import jax
import jax.numpy as jnp
from jax import lax
from jax.experimental import pallas as pl
from jax.experimental.pallas import tpu as pltpu

LEAKY_SLOPE = 0.01   # nn.LeakyReLU() default
BN_EPS = 1e-5        # nn.BatchNorm2d default


# --------------------------------------------------------------------------
# Helpers used inside kernels (all shapes/offsets are static Python ints)
# --------------------------------------------------------------------------
def _shift_lanes(x, off):
    """y[..., p] = x[..., (p + off) % L] for a static offset.

    Lowers to lane rotates (slice + concat along the minor axis)."""
    L = x.shape[-1]
    s = off % L
    if s == 0:
        return x
    return jnp.concatenate([x[:, s:], x[:, :s]], axis=-1)


def _conv_stage(x_pl, w2d, m_ref, mask_set, d, W):
    """One 3x3 conv (stride 1, zero 'same' padding, dilation d).

    x_pl : (Cin, L) planar-flat activation (L = H*W), f32
    w2d  : (Cout, 9*Cin) weight, tap-major / ci-minor
    m_ref: (2, 9, L) border masks; mask_set selects the dilation (0 -> d=1,
           1 -> d=2).  The masks zero every tap contribution that would wrap
           across an image border, which is exactly zero padding.
    Returns (Cout, L) f32.  All 9 taps feed a single MXU matmul (K = 9*Cin).
    """
    L = x_pl.shape[-1]
    cols = []
    for kh in range(3):
        for kw in range(3):
            t = kh * 3 + kw
            off = (kh - 1) * d * W + (kw - 1) * d
            if off == 0:
                cols.append(x_pl)                       # centre tap: mask == 1
            else:
                shifted = _shift_lanes(x_pl, off)       # (Cin, L)
                cols.append(shifted * m_ref[mask_set, t])
    patches = jnp.concatenate(cols, axis=0)             # (9*Cin, L)
    return jnp.dot(w2d, patches, preferred_element_type=jnp.float32)


# --------------------------------------------------------------------------
# Kernels
# --------------------------------------------------------------------------
def _conv1_stats_kernel(x_ref, w1_ref, m_ref, o_ref, *, W):
    """Pass 1: per-image channel sum / sum-of-squares of conv1(x) (for BN)."""
    x = x_ref[0].astype(jnp.float32)                    # (Cin, L)
    w1 = w1_ref[...].astype(jnp.float32)                # (Cout, 9*Cin)
    y = _conv_stage(x, w1, m_ref, 0, 1, W)              # (Cout, L)
    s = jnp.sum(y, axis=1, keepdims=True)               # (Cout, 1)
    ss = jnp.sum(y * y, axis=1, keepdims=True)          # (Cout, 1)
    o_ref[0] = jnp.concatenate([s, ss], axis=1).astype(o_ref.dtype)  # (Cout, 2)


def _resblock_fused_kernel(x_ref, w1_ref, wd_ref, m_ref, sc_ref, sh_ref, o_ref,
                           *, W):
    """Pass 2: conv1 -> BN(scale/shift) -> LeakyReLU -> conv1 -> dia -> conv1
    + residual -> LeakyReLU, fully fused; intermediates stay in VMEM/vregs."""
    x = x_ref[0].astype(jnp.float32)                    # (Cin, L)
    w1 = w1_ref[...].astype(jnp.float32)                # (Cout, 9*Cin)
    wd = wd_ref[...].astype(jnp.float32)

    # conv1(x) -> BatchNorm (folded into scale/shift) -> LeakyReLU
    y = _conv_stage(x, w1, m_ref, 0, 1, W)
    y = y * sc_ref[...] + sh_ref[...]                   # (Cout,L)*(Cout,1)+(Cout,1)
    y = jnp.where(y >= 0, y, LEAKY_SLOPE * y)
    res = y

    # conv1(y) -> dia(.) [dilation 2] -> conv1(.) + res -> LeakyReLU
    x1 = _conv_stage(y, w1, m_ref, 0, 1, W)
    x2 = _conv_stage(x1, wd, m_ref, 1, 2, W)
    out = _conv_stage(x2, w1, m_ref, 0, 1, W) + res
    out = jnp.where(out >= 0, out, LEAKY_SLOPE * out)

    o_ref[0] = out.astype(o_ref.dtype)                  # lane-dense (Cout, L) store


# --------------------------------------------------------------------------
# Wrapper
# --------------------------------------------------------------------------
def _border_masks(H, W, d):
    """(9, H*W) f32 masks: 1 where the tap (kh,kw) with dilation d stays inside
    the image, 0 where the zero padding would have been read."""
    m = np.zeros((9, H * W), np.float32)
    for kh in range(3):
        for kw in range(3):
            dh, dw = (kh - 1) * d, (kw - 1) * d
            hh = np.arange(H)[:, None] + dh
            ww = np.arange(W)[None, :] + dw
            valid = (hh >= 0) & (hh < H) & (ww >= 0) & (ww < W)
            m[kh * 3 + kw] = valid.astype(np.float32).reshape(-1)
    return m


@jax.jit
def resblock1_forward(x_nchw, w1_oihw, wdia_oihw, gamma, beta):
    """Full ResBlock1 forward. Takes/returns PyTorch-style NCHW (no transposes:
    NCHW is already the planar layout the kernels use)."""
    N, Cin, H, W = x_nchw.shape
    Cout = w1_oihw.shape[0]
    assert Cin == Cout, "conv1 is applied to its own output"
    L = H * W

    x_flat = x_nchw.reshape(N, Cin, L).astype(jnp.float32)          # free reshape
    # OIHW -> (Cout, 9*Cin), tap-major / ci-minor (matches patch stacking order)
    w1_2d = jnp.transpose(w1_oihw, (0, 2, 3, 1)).reshape(Cout, 9 * Cin)
    wd_2d = jnp.transpose(wdia_oihw, (0, 2, 3, 1)).reshape(Cout, 9 * Cin)
    masks = jnp.asarray(np.stack([_border_masks(H, W, 1),
                                  _border_masks(H, W, 2)], axis=0))  # (2, 9, L)

    # ---- pass 1: per-image partial BN statistics of conv1(x) ----------------
    stats = pl.pallas_call(
        functools.partial(_conv1_stats_kernel, W=W),
        out_shape=jax.ShapeDtypeStruct((N, Cout, 2), jnp.float32),
        grid=(N,),
        in_specs=[
            pl.BlockSpec((1, Cin, L), lambda n: (n, 0, 0)),
            pl.BlockSpec((Cout, 9 * Cin), lambda n: (0, 0)),
            pl.BlockSpec((2, 9, L), lambda n: (0, 0, 0)),
        ],
        out_specs=pl.BlockSpec((1, Cout, 2), lambda n: (n, 0, 0)),
        compiler_params=pltpu.CompilerParams(dimension_semantics=("parallel",)),
    )(x_flat, w1_2d, masks)

    # Finalize BN (tiny (C,)-sized math; biased variance, training-mode stats),
    # then fold gamma/beta into a single scale/shift applied inside the fused pass.
    cnt = jnp.float32(N * L)
    mean = jnp.sum(stats[:, :, 0], axis=0) / cnt
    var = jnp.maximum(jnp.sum(stats[:, :, 1], axis=0) / cnt - mean * mean, 0.0)
    scale = gamma.astype(jnp.float32) * lax.rsqrt(var + BN_EPS)
    shift = beta.astype(jnp.float32) - mean * scale

    # ---- pass 2: fully fused residual block ---------------------------------
    out_flat = pl.pallas_call(
        functools.partial(_resblock_fused_kernel, W=W),
        out_shape=jax.ShapeDtypeStruct((N, Cout, L), x_nchw.dtype),
        grid=(N,),
        in_specs=[
            pl.BlockSpec((1, Cin, L), lambda n: (n, 0, 0)),
            pl.BlockSpec((Cout, 9 * Cin), lambda n: (0, 0)),
            pl.BlockSpec((Cout, 9 * Cin), lambda n: (0, 0)),
            pl.BlockSpec((2, 9, L), lambda n: (0, 0, 0)),
            pl.BlockSpec((Cout, 1), lambda n: (0, 0)),
            pl.BlockSpec((Cout, 1), lambda n: (0, 0)),
        ],
        out_specs=pl.BlockSpec((1, Cout, L), lambda n: (n, 0, 0)),
        compiler_params=pltpu.CompilerParams(dimension_semantics=("parallel",)),
    )(x_flat, w1_2d, wd_2d, masks, scale.reshape(Cout, 1), shift.reshape(Cout, 1))

    return out_flat.reshape(N, Cout, H, W).astype(x_nchw.dtype)


# --------------------------------------------------------------------------
# Pure-JAX reference (correctness check only)
# --------------------------------------------------------------------------
def jax_reference(x_nchw, w1, wdia, gamma, beta):
    def conv(x, w, dil):
        return lax.conv_general_dilated(
            x, w, window_strides=(1, 1),
            padding=((dil, dil), (dil, dil)),
            rhs_dilation=(dil, dil),
            dimension_numbers=("NCHW", "OIHW", "NCHW"))

    def lrelu(v):
        return jnp.where(v >= 0, v, LEAKY_SLOPE * v)

    y = conv(x_nchw, w1, 1)
    mean = jnp.mean(y, axis=(0, 2, 3), keepdims=True)
    var = jnp.mean((y - mean) ** 2, axis=(0, 2, 3), keepdims=True)
    y = (y - mean) * lax.rsqrt(var + BN_EPS) * gamma.reshape(1, -1, 1, 1) \
        + beta.reshape(1, -1, 1, 1)
    y = lrelu(y)
    res = y
    x1 = conv(y, w1, 1)
    x1 = conv(x1, wdia, 2)
    out = conv(x1, w1, 1)
    return lrelu(out + res)


# --------------------------------------------------------------------------
if __name__ == "__main__":
    key = jax.random.PRNGKey(0)
    k_w1, k_wd, k_g, k_b, k_x = jax.random.split(key, 5)

    # inChannals must equal outChannals (conv1 is applied to its own output).
    Cin = Cout = 4
    N, H, W = 2, 16, 16

    w1_oihw = 0.1 * jax.random.normal(k_w1, (Cout, Cin, 3, 3), jnp.float32)
    wdia_oihw = 0.1 * jax.random.normal(k_wd, (Cout, Cin, 3, 3), jnp.float32)
    gamma = 1.0 + 0.1 * jax.random.normal(k_g, (Cout,), jnp.float32)
    beta = 0.1 * jax.random.normal(k_b, (Cout,), jnp.float32)
    x_nchw = jax.random.normal(k_x, (N, Cin, H, W), jnp.float32)

    out = resblock1_forward(x_nchw, w1_oihw, wdia_oihw, gamma, beta)
    out = jax.block_until_ready(out)

    ref = jax_reference(x_nchw, w1_oihw, wdia_oihw, gamma, beta)
    assert out.shape == (N, Cout, H, W)
    max_err = jnp.max(jnp.abs(out - ref))
    assert jnp.allclose(out, ref, atol=1e-4, rtol=1e-4), \
        f"max abs err = {max_err}"

    print("KERNEL_OK")
</pallas_src>

<mosaic_0001>
module attributes {stable_mosaic.version = 11 : i64} {
  func.func @_conv1_stats_kernel(%arg0: i32, %arg1: memref<1x4x256xf32, #tpu.memory_space<vmem>>, %arg2: memref<4x36xf32, #tpu.memory_space<vmem>>, %arg3: memref<2x9x256xf32, #tpu.memory_space<vmem>>, %arg4: memref<1x4x2xf32, #tpu.memory_space<vmem>>) attributes {dimension_semantics = [#tpu.dimension_semantics<parallel>], iteration_bounds = array<i64: 2>, scalar_prefetch = 0 : i64, scratch_operands = 0 : i64, tpu.core_type = #tpu.core_type<tc>, window_params = [{transform_indices = @transform_0, window_bounds = array<i64: 1, 4, 256>}, {pipeline_mode = #tpu.pipeline_mode<synchronous>, transform_indices = @transform_1, window_bounds = array<i64: 4, 36>}, {pipeline_mode = #tpu.pipeline_mode<synchronous>, transform_indices = @transform_2, window_bounds = array<i64: 2, 9, 256>}, {transform_indices = @transform_3, window_bounds = array<i64: 1, 4, 2>}]} {
    %c0 = arith.constant 0 : index
    %c0_0 = arith.constant 0 : index
    %c0_1 = arith.constant 0 : index
    %0 = vector.load %arg1[%c0, %c0_0, %c0_1] : memref<1x4x256xf32, #tpu.memory_space<vmem>>, vector<1x4x256xf32>
    %1 = vector.shape_cast %0 : vector<1x4x256xf32> to vector<4x256xf32>
    %c0_2 = arith.constant 0 : index
    %c0_3 = arith.constant 0 : index
    %2 = vector.load %arg2[%c0_2, %c0_3] : memref<4x36xf32, #tpu.memory_space<vmem>>, vector<4x36xf32>
    %3 = vector.extract_strided_slice %1 {offsets = [0, 239], sizes = [4, 17], strides = [1, 1]} : vector<4x256xf32> to vector<4x17xf32>
    %4 = vector.extract_strided_slice %1 {offsets = [0, 0], sizes = [4, 239], strides = [1, 1]} : vector<4x256xf32> to vector<4x239xf32>
    %5 = tpu.concatenate %3, %4 in 1 : vector<4x17xf32>, vector<4x239xf32> -> vector<4x256xf32>
    %c0_4 = arith.constant 0 : index
    %c0_5 = arith.constant 0 : index
    %c0_6 = arith.constant 0 : index
    %6 = vector.load %arg3[%c0_4, %c0_5, %c0_6] : memref<2x9x256xf32, #tpu.memory_space<vmem>>, vector<1x1x256xf32>
    %7 = vector.shape_cast %6 : vector<1x1x256xf32> to vector<256xf32>
    %8 = vector.shape_cast %7 : vector<256xf32> to vector<1x256xf32>
    %9 = vector.broadcast %8 : vector<1x256xf32> to vector<4x256xf32>
    %10 = arith.mulf %5, %9 : vector<4x256xf32>
    %11 = vector.extract_strided_slice %1 {offsets = [0, 240], sizes = [4, 16], strides = [1, 1]} : vector<4x256xf32> to vector<4x16xf32>
    %12 = vector.extract_strided_slice %1 {offsets = [0, 0], sizes = [4, 240], strides = [1, 1]} : vector<4x256xf32> to vector<4x240xf32>
    %13 = tpu.concatenate %11, %12 in 1 : vector<4x16xf32>, vector<4x240xf32> -> vector<4x256xf32>
    %c0_7 = arith.constant 0 : index
    %c1 = arith.constant 1 : index
    %c0_8 = arith.constant 0 : index
    %14 = vector.load %arg3[%c0_7, %c1, %c0_8] : memref<2x9x256xf32, #tpu.memory_space<vmem>>, vector<1x1x256xf32>
    %15 = vector.shape_cast %14 : vector<1x1x256xf32> to vector<256xf32>
    %16 = vector.shape_cast %15 : vector<256xf32> to vector<1x256xf32>
    %17 = vector.broadcast %16 : vector<1x256xf32> to vector<4x256xf32>
    %18 = arith.mulf %13, %17 : vector<4x256xf32>
    %19 = vector.extract_strided_slice %1 {offsets = [0, 241], sizes = [4, 15], strides = [1, 1]} : vector<4x256xf32> to vector<4x15xf32>
    %20 = vector.extract_strided_slice %1 {offsets = [0, 0], sizes = [4, 241], strides = [1, 1]} : vector<4x256xf32> to vector<4x241xf32>
    %21 = tpu.concatenate %19, %20 in 1 : vector<4x15xf32>, vector<4x241xf32> -> vector<4x256xf32>
    %c0_9 = arith.constant 0 : index
    %c2 = arith.constant 2 : index
    %c0_10 = arith.constant 0 : index
    %22 = vector.load %arg3[%c0_9, %c2, %c0_10] : memref<2x9x256xf32, #tpu.memory_space<vmem>>, vector<1x1x256xf32>
    %23 = vector.shape_cast %22 : vector<1x1x256xf32> to vector<256xf32>
    %24 = vector.shape_cast %23 : vector<256xf32> to vector<1x256xf32>
    %25 = vector.broadcast %24 : vector<1x256xf32> to vector<4x256xf32>
    %26 = arith.mulf %21, %25 : vector<4x256xf32>
    %27 = vector.extract_strided_slice %1 {offsets = [0, 255], sizes = [4, 1], strides = [1, 1]} : vector<4x256xf32> to vector<4x1xf32>
    %28 = vector.extract_strided_slice %1 {offsets = [0, 0], sizes = [4, 255], strides = [1, 1]} : vector<4x256xf32> to vector<4x255xf32>
    %29 = tpu.concatenate %27, %28 in 1 : vector<4x1xf32>, vector<4x255xf32> -> vector<4x256xf32>
    %c0_11 = arith.constant 0 : index
    %c3 = arith.constant 3 : index
    %c0_12 = arith.constant 0 : index
    %30 = vector.load %arg3[%c0_11, %c3, %c0_12] : memref<2x9x256xf32, #tpu.memory_space<vmem>>, vector<1x1x256xf32>
    %31 = vector.shape_cast %30 : vector<1x1x256xf32> to vector<256xf32>
    %32 = vector.shape_cast %31 : vector<256xf32> to vector<1x256xf32>
    %33 = vector.broadcast %32 : vector<1x256xf32> to vector<4x256xf32>
    %34 = arith.mulf %29, %33 : vector<4x256xf32>
    %35 = vector.extract_strided_slice %1 {offsets = [0, 1], sizes = [4, 255], strides = [1, 1]} : vector<4x256xf32> to vector<4x255xf32>
    %36 = vector.extract_strided_slice %1 {offsets = [0, 0], sizes = [4, 1], strides = [1, 1]} : vector<4x256xf32> to vector<4x1xf32>
    %37 = tpu.concatenate %35, %36 in 1 : vector<4x255xf32>, vector<4x1xf32> -> vector<4x256xf32>
    %c0_13 = arith.constant 0 : index
    %c5 = arith.constant 5 : index
    %c0_14 = arith.constant 0 : index
    %38 = vector.load %arg3[%c0_13, %c5, %c0_14] : memref<2x9x256xf32, #tpu.memory_space<vmem>>, vector<1x1x256xf32>
    %39 = vector.shape_cast %38 : vector<1x1x256xf32> to vector<256xf32>
    %40 = vector.shape_cast %39 : vector<256xf32> to vector<1x256xf32>
    %41 = vector.broadcast %40 : vector<1x256xf32> to vector<4x256xf32>
    %42 = arith.mulf %37, %41 : vector<4x256xf32>
    %43 = vector.extract_strided_slice %1 {offsets = [0, 15], sizes = [4, 241], strides = [1, 1]} : vector<4x256xf32> to vector<4x241xf32>
    %44 = vector.extract_strided_slice %1 {offsets = [0, 0], sizes = [4, 15], strides = [1, 1]} : vector<4x256xf32> to vector<4x15xf32>
    %45 = tpu.concatenate %43, %44 in 1 : vector<4x241xf32>, vector<4x15xf32> -> vector<4x256xf32>
    %c0_15 = arith.constant 0 : index
    %c6 = arith.constant 6 : index
    %c0_16 = arith.constant 0 : index
    %46 = vector.load %arg3[%c0_15, %c6, %c0_16] : memref<2x9x256xf32, #tpu.memory_space<vmem>>, vector<1x1x256xf32>
    %47 = vector.shape_cast %46 : vector<1x1x256xf32> to vector<256xf32>
    %48 = vector.shape_cast %47 : vector<256xf32> to vector<1x256xf32>
    %49 = vector.broadcast %48 : vector<1x256xf32> to vector<4x256xf32>
    %50 = arith.mulf %45, %49 : vector<4x256xf32>
    %51 = vector.extract_strided_slice %1 {offsets = [0, 16], sizes = [4, 240], strides = [1, 1]} : vector<4x256xf32> to vector<4x240xf32>
    %52 = vector.extract_strided_slice %1 {offsets = [0, 0], sizes = [4, 16], strides = [1, 1]} : vector<4x256xf32> to vector<4x16xf32>
    %53 = tpu.concatenate %51, %52 in 1 : vector<4x240xf32>, vector<4x16xf32> -> vector<4x256xf32>
    %c0_17 = arith.constant 0 : index
    %c7 = arith.constant 7 : index
    %c0_18 = arith.constant 0 : index
    %54 = vector.load %arg3[%c0_17, %c7, %c0_18] : memref<2x9x256xf32, #tpu.memory_space<vmem>>, vector<1x1x256xf32>
    %55 = vector.shape_cast %54 : vector<1x1x256xf32> to vector<256xf32>
    %56 = vector.shape_cast %55 : vector<256xf32> to vector<1x256xf32>
    %57 = vector.broadcast %56 : vector<1x256xf32> to vector<4x256xf32>
    %58 = arith.mulf %53, %57 : vector<4x256xf32>
    %59 = vector.extract_strided_slice %1 {offsets = [0, 17], sizes = [4, 239], strides = [1, 1]} : vector<4x256xf32> to vector<4x239xf32>
    %60 = vector.extract_strided_slice %1 {offsets = [0, 0], sizes = [4, 17], strides = [1, 1]} : vector<4x256xf32> to vector<4x17xf32>
    %61 = tpu.concatenate %59, %60 in 1 : vector<4x239xf32>, vector<4x17xf32> -> vector<4x256xf32>
    %c0_19 = arith.constant 0 : index
    %c8 = arith.constant 8 : index
    %c0_20 = arith.constant 0 : index
    %62 = vector.load %arg3[%c0_19, %c8, %c0_20] : memref<2x9x256xf32, #tpu.memory_space<vmem>>, vector<1x1x256xf32>
    %63 = vector.shape_cast %62 : vector<1x1x256xf32> to vector<256xf32>
    %64 = vector.shape_cast %63 : vector<256xf32> to vector<1x256xf32>
    %65 = vector.broadcast %64 : vector<1x256xf32> to vector<4x256xf32>
    %66 = arith.mulf %61, %65 : vector<4x256xf32>
    %67 = tpu.concatenate %10, %18, %26, %34, %1, %42, %50, %58, %66 in 0 : vector<4x256xf32>, vector<4x256xf32>, vector<4x256xf32>, vector<4x256xf32>, vector<4x256xf32>, vector<4x256xf32>, vector<4x256xf32>, vector<4x256xf32>, vector<4x256xf32> -> vector<36x256xf32>
    %cst = arith.constant dense<0.000000e+00> : vector<4x256xf32>
    %68 = tpu.matmul %2, %67, %cst {dimension_numbers = #tpu.dot_dimension_numbers<[1], [0], [0], [1], [0, 0, 1, 1], [], []>} : vector<4x36xf32>, vector<36x256xf32>, vector<4x256xf32> -> vector<4x256xf32>
    %cst_21 = arith.constant dense<0.000000e+00> : vector<4xf32>
    %69 = vector.multi_reduction <add>, %68, %cst_21 [1] : vector<4x256xf32> to vector<4xf32>
    %70 = vector.shape_cast %69 : vector<4xf32> to vector<4x1xf32>
    %71 = arith.mulf %68, %68 : vector<4x256xf32>
    %cst_22 = arith.constant dense<0.000000e+00> : vector<4xf32>
    %72 = vector.multi_reduction <add>, %71, %cst_22 [1] : vector<4x256xf32> to vector<4xf32>
    %73 = vector.shape_cast %72 : vector<4xf32> to vector<4x1xf32>
    %74 = tpu.concatenate %70, %73 in 1 : vector<4x1xf32>, vector<4x1xf32> -> vector<4x2xf32>
    %c0_23 = arith.constant 0 : index
    %c0_24 = arith.constant 0 : index
    %c0_25 = arith.constant 0 : index
    %75 = vector.load %arg4[%c0_23, %c0_24, %c0_25] : memref<1x4x2xf32, #tpu.memory_space<vmem>>, vector<1x4x2xf32>
    %76 = vector.shape_cast %75 : vector<1x4x2xf32> to vector<4x2xf32>
    %77 = vector.shape_cast %74 : vector<4x2xf32> to vector<1x4x2xf32>
    tpu.vector_store %arg4[%c0_23, %c0_24, %c0_25], %77 {strides = array<i32>} : memref<1x4x2xf32, #tpu.memory_space<vmem>>, vector<1x4x2xf32>,
    return
  }
  func.func @transform_0(%arg0: i32) -> (i32, i32, i32) {
    %c0_i32 = arith.constant 0 : i32
    %c0_i32_0 = arith.constant 0 : i32
    %c0_i32_1 = arith.constant 0 : i32
    return %arg0, %c0_i32, %c0_i32_0 : i32, i32, i32
  }
  func.func @transform_1(%arg0: i32) -> (i32, i32) {
    %c0_i32 = arith.constant 0 : i32
    %c0_i32_0 = arith.constant 0 : i32
    %c0_i32_1 = arith.constant 0 : i32
    return %c0_i32, %c0_i32_0 : i32, i32
  }
  func.func @transform_2(%arg0: i32) -> (i32, i32, i32) {
    %c0_i32 = arith.constant 0 : i32
    %c0_i32_0 = arith.constant 0 : i32
    %c0_i32_1 = arith.constant 0 : i32
    %c0_i32_2 = arith.constant 0 : i32
    return %c0_i32, %c0_i32_0, %c0_i32_1 : i32, i32, i32
  }
  func.func @transform_3(%arg0: i32) -> (i32, i32, i32) {
    %c0_i32 = arith.constant 0 : i32
    %c0_i32_0 = arith.constant 0 : i32
    %c0_i32_1 = arith.constant 0 : i32
    return %arg0, %c0_i32, %c0_i32_0 : i32, i32, i32
  }
}

module attributes {stable_mosaic.version = 11 : i64} {
  func.func @_resblock_fused_kernel(%arg0: i32, %arg1: memref<1x4x256xf32, #tpu.memory_space<vmem>>, %arg2: memref<4x36xf32, #tpu.memory_space<vmem>>, %arg3: memref<4x36xf32, #tpu.memory_space<vmem>>, %arg4: memref<2x9x256xf32, #tpu.memory_space<vmem>>, %arg5: memref<4x1xf32, #tpu.memory_space<vmem>>, %arg6: memref<4x1xf32, #tpu.memory_space<vmem>>, %arg7: memref<1x4x256xf32, #tpu.memory_space<vmem>>) attributes {dimension_semantics = [#tpu.dimension_semantics<parallel>], iteration_bounds = array<i64: 2>, scalar_prefetch = 0 : i64, scratch_operands = 0 : i64, tpu.core_type = #tpu.core_type<tc>, window_params = [{transform_indices = @transform_0, window_bounds = array<i64: 1, 4, 256>}, {pipeline_mode = #tpu.pipeline_mode<synchronous>, transform_indices = @transform_1, window_bounds = array<i64: 4, 36>}, {pipeline_mode = #tpu.pipeline_mode<synchronous>, transform_indices = @transform_2, window_bounds = array<i64: 4, 36>}, {pipeline_mode = #tpu.pipeline_mode<synchronous>, transform_indices = @transform_3, window_bounds = array<i64: 2, 9, 256>}, {pipeline_mode = #tpu.pipeline_mode<synchronous>, transform_indices = @transform_4, window_bounds = array<i64: 4, 1>}, {pipeline_mode = #tpu.pipeline_mode<synchronous>, transform_indices = @transform_5, window_bounds = array<i64: 4, 1>}, {transform_indices = @transform_6, window_bounds = array<i64: 1, 4, 256>}]} {
    %c0 = arith.constant 0 : index
    %c0_0 = arith.constant 0 : index
    %c0_1 = arith.constant 0 : index
    %0 = vector.load %arg1[%c0, %c0_0, %c0_1] : memref<1x4x256xf32, #tpu.memory_space<vmem>>, vector<1x4x256xf32>
    %1 = vector.shape_cast %0 : vector<1x4x256xf32> to vector<4x256xf32>
    %c0_2 = arith.constant 0 : index
    %c0_3 = arith.constant 0 : index
    %2 = vector.load %arg2[%c0_2, %c0_3] : memref<4x36xf32, #tpu.memory_space<vmem>>, vector<4x36xf32>
    %c0_4 = arith.constant 0 : index
    %c0_5 = arith.constant 0 : index
    %3 = vector.load %arg3[%c0_4, %c0_5] : memref<4x36xf32, #tpu.memory_space<vmem>>, vector<4x36xf32>
    %4 = vector.extract_strided_slice %1 {offsets = [0, 239], sizes = [4, 17], strides = [1, 1]} : vector<4x256xf32> to vector<4x17xf32>
    %5 = vector.extract_strided_slice %1 {offsets = [0, 0], sizes = [4, 239], strides = [1, 1]} : vector<4x256xf32> to vector<4x239xf32>
    %6 = tpu.concatenate %4, %5 in 1 : vector<4x17xf32>, vector<4x239xf32> -> vector<4x256xf32>
    %c0_6 = arith.constant 0 : index
    %c0_7 = arith.constant 0 : index
    %c0_8 = arith.constant 0 : index
    %7 = vector.load %arg4[%c0_6, %c0_7, %c0_8] : memref<2x9x256xf32, #tpu.memory_space<vmem>>, vector<1x1x256xf32>
    %8 = vector.shape_cast %7 : vector<1x1x256xf32> to vector<256xf32>
    %9 = vector.shape_cast %8 : vector<256xf32> to vector<1x256xf32>
    %10 = vector.broadcast %9 : vector<1x256xf32> to vector<4x256xf32>
    %11 = arith.mulf %6, %10 : vector<4x256xf32>
    %12 = vector.extract_strided_slice %1 {offsets = [0, 240], sizes = [4, 16], strides = [1, 1]} : vector<4x256xf32> to vector<4x16xf32>
    %13 = vector.extract_strided_slice %1 {offsets = [0, 0], sizes = [4, 240], strides = [1, 1]} : vector<4x256xf32> to vector<4x240xf32>
    %14 = tpu.concatenate %12, %13 in 1 : vector<4x16xf32>, vector<4x240xf32> -> vector<4x256xf32>
    %c0_9 = arith.constant 0 : index
    %c1 = arith.constant 1 : index
    %c0_10 = arith.constant 0 : index
    %15 = vector.load %arg4[%c0_9, %c1, %c0_10] : memref<2x9x256xf32, #tpu.memory_space<vmem>>, vector<1x1x256xf32>
    %16 = vector.shape_cast %15 : vector<1x1x256xf32> to vector<256xf32>
    %17 = vector.shape_cast %16 : vector<256xf32> to vector<1x256xf32>
    %18 = vector.broadcast %17 : vector<1x256xf32> to vector<4x256xf32>
    %19 = arith.mulf %14, %18 : vector<4x256xf32>
    %20 = vector.extract_strided_slice %1 {offsets = [0, 241], sizes = [4, 15], strides = [1, 1]} : vector<4x256xf32> to vector<4x15xf32>
    %21 = vector.extract_strided_slice %1 {offsets = [0, 0], sizes = [4, 241], strides = [1, 1]} : vector<4x256xf32> to vector<4x241xf32>
    %22 = tpu.concatenate %20, %21 in 1 : vector<4x15xf32>, vector<4x241xf32> -> vector<4x256xf32>
    %c0_11 = arith.constant 0 : index
    %c2 = arith.constant 2 : index
    %c0_12 = arith.constant 0 : index
    %23 = vector.load %arg4[%c0_11, %c2, %c0_12] : memref<2x9x256xf32, #tpu.memory_space<vmem>>, vector<1x1x256xf32>
    %24 = vector.shape_cast %23 : vector<1x1x256xf32> to vector<256xf32>
    %25 = vector.shape_cast %24 : vector<256xf32> to vector<1x256xf32>
    %26 = vector.broadcast %25 : vector<1x256xf32> to vector<4x256xf32>
    %27 = arith.mulf %22, %26 : vector<4x256xf32>
    %28 = vector.extract_strided_slice %1 {offsets = [0, 255], sizes = [4, 1], strides = [1, 1]} : vector<4x256xf32> to vector<4x1xf32>
    %29 = vector.extract_strided_slice %1 {offsets = [0, 0], sizes = [4, 255], strides = [1, 1]} : vector<4x256xf32> to vector<4x255xf32>
    %30 = tpu.concatenate %28, %29 in 1 : vector<4x1xf32>, vector<4x255xf32> -> vector<4x256xf32>
    %c0_13 = arith.constant 0 : index
    %c3 = arith.constant 3 : index
    %c0_14 = arith.constant 0 : index
    %31 = vector.load %arg4[%c0_13, %c3, %c0_14] : memref<2x9x256xf32, #tpu.memory_space<vmem>>, vector<1x1x256xf32>
    %32 = vector.shape_cast %31 : vector<1x1x256xf32> to vector<256xf32>
    %33 = vector.shape_cast %32 : vector<256xf32> to vector<1x256xf32>
    %34 = vector.broadcast %33 : vector<1x256xf32> to vector<4x256xf32>
    %35 = arith.mulf %30, %34 : vector<4x256xf32>
    %36 = vector.extract_strided_slice %1 {offsets = [0, 1], sizes = [4, 255], strides = [1, 1]} : vector<4x256xf32> to vector<4x255xf32>
    %37 = vector.extract_strided_slice %1 {offsets = [0, 0], sizes = [4, 1], strides = [1, 1]} : vector<4x256xf32> to vector<4x1xf32>
    %38 = tpu.concatenate %36, %37 in 1 : vector<4x255xf32>, vector<4x1xf32> -> vector<4x256xf32>
    %c0_15 = arith.constant 0 : index
    %c5 = arith.constant 5 : index
    %c0_16 = arith.constant 0 : index
    %39 = vector.load %arg4[%c0_15, %c5, %c0_16] : memref<2x9x256xf32, #tpu.memory_space<vmem>>, vector<1x1x256xf32>
    %40 = vector.shape_cast %39 : vector<1x1x256xf32> to vector<256xf32>
    %41 = vector.shape_cast %40 : vector<256xf32> to vector<1x256xf32>
    %42 = vector.broadcast %41 : vector<1x256xf32> to vector<4x256xf32>
    %43 = arith.mulf %38, %42 : vector<4x256xf32>
    %44 = vector.extract_strided_slice %1 {offsets = [0, 15], sizes = [4, 241], strides = [1, 1]} : vector<4x256xf32> to vector<4x241xf32>
    %45 = vector.extract_strided_slice %1 {offsets = [0, 0], sizes = [4, 15], strides = [1, 1]} : vector<4x256xf32> to vector<4x15xf32>
    %46 = tpu.concatenate %44, %45 in 1 : vector<4x241xf32>, vector<4x15xf32> -> vector<4x256xf32>
    %c0_17 = arith.constant 0 : index
    %c6 = arith.constant 6 : index
    %c0_18 = arith.constant 0 : index
    %47 = vector.load %arg4[%c0_17, %c6, %c0_18] : memref<2x9x256xf32, #tpu.memory_space<vmem>>, vector<1x1x256xf32>
    %48 = vector.shape_cast %47 : vector<1x1x256xf32> to vector<256xf32>
    %49 = vector.shape_cast %48 : vector<256xf32> to vector<1x256xf32>
    %50 = vector.broadcast %49 : vector<1x256xf32> to vector<4x256xf32>
    %51 = arith.mulf %46, %50 : vector<4x256xf32>
    %52 = vector.extract_strided_slice %1 {offsets = [0, 16], sizes = [4, 240], strides = [1, 1]} : vector<4x256xf32> to vector<4x240xf32>
    %53 = vector.extract_strided_slice %1 {offsets = [0, 0], sizes = [4, 16], strides = [1, 1]} : vector<4x256xf32> to vector<4x16xf32>
    %54 = tpu.concatenate %52, %53 in 1 : vector<4x240xf32>, vector<4x16xf32> -> vector<4x256xf32>
    %c0_19 = arith.constant 0 : index
    %c7 = arith.constant 7 : index
    %c0_20 = arith.constant 0 : index
    %55 = vector.load %arg4[%c0_19, %c7, %c0_20] : memref<2x9x256xf32, #tpu.memory_space<vmem>>, vector<1x1x256xf32>
    %56 = vector.shape_cast %55 : vector<1x1x256xf32> to vector<256xf32>
    %57 = vector.shape_cast %56 : vector<256xf32> to vector<1x256xf32>
    %58 = vector.broadcast %57 : vector<1x256xf32> to vector<4x256xf32>
    %59 = arith.mulf %54, %58 : vector<4x256xf32>
    %60 = vector.extract_strided_slice %1 {offsets = [0, 17], sizes = [4, 239], strides = [1, 1]} : vector<4x256xf32> to vector<4x239xf32>
    %61 = vector.extract_strided_slice %1 {offsets = [0, 0], sizes = [4, 17], strides = [1, 1]} : vector<4x256xf32> to vector<4x17xf32>
    %62 = tpu.concatenate %60, %61 in 1 : vector<4x239xf32>, vector<4x17xf32> -> vector<4x256xf32>
    %c0_21 = arith.constant 0 : index
    %c8 = arith.constant 8 : index
    %c0_22 = arith.constant 0 : index
    %63 = vector.load %arg4[%c0_21, %c8, %c0_22] : memref<2x9x256xf32, #tpu.memory_space<vmem>>, vector<1x1x256xf32>
    %64 = vector.shape_cast %63 : vector<1x1x256xf32> to vector<256xf32>
    %65 = vector.shape_cast %64 : vector<256xf32> to vector<1x256xf32>
    %66 = vector.broadcast %65 : vector<1x256xf32> to vector<4x256xf32>
    %67 = arith.mulf %62, %66 : vector<4x256xf32>
    %68 = tpu.concatenate %11, %19, %27, %35, %1, %43, %51, %59, %67 in 0 : vector<4x256xf32>, vector<4x256xf32>, vector<4x256xf32>, vector<4x256xf32>, vector<4x256xf32>, vector<4x256xf32>, vector<4x256xf32>, vector<4x256xf32>, vector<4x256xf32> -> vector<36x256xf32>
    %cst = arith.constant dense<0.000000e+00> : vector<4x256xf32>
    %69 = tpu.matmul %2, %68, %cst {dimension_numbers = #tpu.dot_dimension_numbers<[1], [0], [0], [1], [0, 0, 1, 1], [], []>} : vector<4x36xf32>, vector<36x256xf32>, vector<4x256xf32> -> vector<4x256xf32>
    %c0_23 = arith.constant 0 : index
    %c0_24 = arith.constant 0 : index
    %70 = vector.load %arg5[%c0_23, %c0_24] : memref<4x1xf32, #tpu.memory_space<vmem>>, vector<4x1xf32>
    %71 = vector.broadcast %70 : vector<4x1xf32> to vector<4x256xf32>
    %72 = arith.mulf %69, %71 : vector<4x256xf32>
    %c0_25 = arith.constant 0 : index
    %c0_26 = arith.constant 0 : index
    %73 = vector.load %arg6[%c0_25, %c0_26] : memref<4x1xf32, #tpu.memory_space<vmem>>, vector<4x1xf32>
    %74 = vector.broadcast %73 : vector<4x1xf32> to vector<4x256xf32>
    %75 = arith.addf %72, %74 : vector<4x256xf32>
    %cst_27 = arith.constant 0.000000e+00 : f32
    %76 = vector.broadcast %cst_27 : f32 to vector<4x256xf32>
    %77 = arith.cmpf oge, %75, %76 : vector<4x256xf32>
    %cst_28 = arith.constant 0.00999999977 : f32
    %78 = vector.broadcast %cst_28 : f32 to vector<4x256xf32>
    %79 = arith.mulf %78, %75 : vector<4x256xf32>
    %80 = arith.select %77, %75, %79 : vector<4x256xi1>, vector<4x256xf32>
    %81 = vector.extract_strided_slice %80 {offsets = [0, 239], sizes = [4, 17], strides = [1, 1]} : vector<4x256xf32> to vector<4x17xf32>
    %82 = vector.extract_strided_slice %80 {offsets = [0, 0], sizes = [4, 239], strides = [1, 1]} : vector<4x256xf32> to vector<4x239xf32>
    %83 = tpu.concatenate %81, %82 in 1 : vector<4x17xf32>, vector<4x239xf32> -> vector<4x256xf32>
    %c0_29 = arith.constant 0 : index
    %c0_30 = arith.constant 0 : index
    %c0_31 = arith.constant 0 : index
    %84 = vector.load %arg4[%c0_29, %c0_30, %c0_31] : memref<2x9x256xf32, #tpu.memory_space<vmem>>, vector<1x1x256xf32>
    %85 = vector.shape_cast %84 : vector<1x1x256xf32> to vector<256xf32>
    %86 = vector.shape_cast %85 : vector<256xf32> to vector<1x256xf32>
    %87 = vector.broadcast %86 : vector<1x256xf32> to vector<4x256xf32>
    %88 = arith.mulf %83, %87 : vector<4x256xf32>
    %89 = vector.extract_strided_slice %80 {offsets = [0, 240], sizes = [4, 16], strides = [1, 1]} : vector<4x256xf32> to vector<4x16xf32>
    %90 = vector.extract_strided_slice %80 {offsets = [0, 0], sizes = [4, 240], strides = [1, 1]} : vector<4x256xf32> to vector<4x240xf32>
    %91 = tpu.concatenate %89, %90 in 1 : vector<4x16xf32>, vector<4x240xf32> -> vector<4x256xf32>
    %c0_32 = arith.constant 0 : index
    %c1_33 = arith.constant 1 : index
    %c0_34 = arith.constant 0 : index
    %92 = vector.load %arg4[%c0_32, %c1_33, %c0_34] : memref<2x9x256xf32, #tpu.memory_space<vmem>>, vector<1x1x256xf32>
    %93 = vector.shape_cast %92 : vector<1x1x256xf32> to vector<256xf32>
    %94 = vector.shape_cast %93 : vector<256xf32> to vector<1x256xf32>
    %95 = vector.broadcast %94 : vector<1x256xf32> to vector<4x256xf32>
    %96 = arith.mulf %91, %95 : vector<4x256xf32>
    %97 = vector.extract_strided_slice %80 {offsets = [0, 241], sizes = [4, 15], strides = [1, 1]} : vector<4x256xf32> to vector<4x15xf32>
    %98 = vector.extract_strided_slice %80 {offsets = [0, 0], sizes = [4, 241], strides = [1, 1]} : vector<4x256xf32> to vector<4x241xf32>
    %99 = tpu.concatenate %97, %98 in 1 : vector<4x15xf32>, vector<4x241xf32> -> vector<4x256xf32>
    %c0_35 = arith.constant 0 : index
    %c2_36 = arith.constant 2 : index
    %c0_37 = arith.constant 0 : index
    %100 = vector.load %arg4[%c0_35, %c2_36, %c0_37] : memref<2x9x256xf32, #tpu.memory_space<vmem>>, vector<1x1x256xf32>
    %101 = vector.shape_cast %100 : vector<1x1x256xf32> to vector<256xf32>
    %102 = vector.shape_cast %101 : vector<256xf32> to vector<1x256xf32>
    %103 = vector.broadcast %102 : vector<1x256xf32> to vector<4x256xf32>
    %104 = arith.mulf %99, %103 : vector<4x256xf32>
    %105 = vector.extract_strided_slice %80 {offsets = [0, 255], sizes = [4, 1], strides = [1, 1]} : vector<4x256xf32> to vector<4x1xf32>
    %106 = vector.extract_strided_slice %80 {offsets = [0, 0], sizes = [4, 255], strides = [1, 1]} : vector<4x256xf32> to vector<4x255xf32>
    %107 = tpu.concatenate %105, %106 in 1 : vector<4x1xf32>, vector<4x255xf32> -> vector<4x256xf32>
    %c0_38 = arith.constant 0 : index
    %c3_39 = arith.constant 3 : index
    %c0_40 = arith.constant 0 : index
    %108 = vector.load %arg4[%c0_38, %c3_39, %c0_40] : memref<2x9x256xf32, #tpu.memory_space<vmem>>, vector<1x1x256xf32>
    %109 = vector.shape_cast %108 : vector<1x1x256xf32> to vector<256xf32>
    %110 = vector.shape_cast %109 : vector<256xf32> to vector<1x256xf32>
    %111 = vector.broadcast %110 : vector<1x256xf32> to vector<4x256xf32>
    %112 = arith.mulf %107, %111 : vector<4x256xf32>
    %113 = vector.extract_strided_slice %80 {offsets = [0, 1], sizes = [4, 255], strides = [1, 1]} : vector<4x256xf32> to vector<4x255xf32>
    %114 = vector.extract_strided_slice %80 {offsets = [0, 0], sizes = [4, 1], strides = [1, 1]} : vector<4x256xf32> to vector<4x1xf32>
    %115 = tpu.concatenate %113, %114 in 1 : vector<4x255xf32>, vector<4x1xf32> -> vector<4x256xf32>
    %c0_41 = arith.constant 0 : index
    %c5_42 = arith.constant 5 : index
    %c0_43 = arith.constant 0 : index
    %116 = vector.load %arg4[%c0_41, %c5_42, %c0_43] : memref<2x9x256xf32, #tpu.memory_space<vmem>>, vector<1x1x256xf32>
    %117 = vector.shape_cast %116 : vector<1x1x256xf32> to vector<256xf32>
    %118 = vector.shape_cast %117 : vector<256xf32> to vector<1x256xf32>
    %119 = vector.broadcast %118 : vector<1x256xf32> to vector<4x256xf32>
    %120 = arith.mulf %115, %119 : vector<4x256xf32>
    %121 = vector.extract_strided_slice %80 {offsets = [0, 15], sizes = [4, 241], strides = [1, 1]} : vector<4x256xf32> to vector<4x241xf32>
    %122 = vector.extract_strided_slice %80 {offsets = [0, 0], sizes = [4, 15], strides = [1, 1]} : vector<4x256xf32> to vector<4x15xf32>
    %123 = tpu.concatenate %121, %122 in 1 : vector<4x241xf32>, vector<4x15xf32> -> vector<4x256xf32>
    %c0_44 = arith.constant 0 : index
    %c6_45 = arith.constant 6 : index
    %c0_46 = arith.constant 0 : index
    %124 = vector.load %arg4[%c0_44, %c6_45, %c0_46] : memref<2x9x256xf32, #tpu.memory_space<vmem>>, vector<1x1x256xf32>
    %125 = vector.shape_cast %124 : vector<1x1x256xf32> to vector<256xf32>
    %126 = vector.shape_cast %125 : vector<256xf32> to vector<1x256xf32>
    %127 = vector.broadcast %126 : vector<1x256xf32> to vector<4x256xf32>
    %128 = arith.mulf %123, %127 : vector<4x256xf32>
    %129 = vector.extract_strided_slice %80 {offsets = [0, 16], sizes = [4, 240], strides = [1, 1]} : vector<4x256xf32> to vector<4x240xf32>
    %130 = vector.extract_strided_slice %80 {offsets = [0, 0], sizes = [4, 16], strides = [1, 1]} : vector<4x256xf32> to vector<4x16xf32>
    %131 = tpu.concatenate %129, %130 in 1 : vector<4x240xf32>, vector<4x16xf32> -> vector<4x256xf32>
    %c0_47 = arith.constant 0 : index
    %c7_48 = arith.constant 7 : index
    %c0_49 = arith.constant 0 : index
    %132 = vector.load %arg4[%c0_47, %c7_48, %c0_49] : memref<2x9x256xf32, #tpu.memory_space<vmem>>, vector<1x1x256xf32>
    %133 = vector.shape_cast %132 : vector<1x1x256xf32> to vector<256xf32>
    %134 = vector.shape_cast %133 : vector<256xf32> to vector<1x256xf32>
    %135 = vector.broadcast %134 : vector<1x256xf32> to vector<4x256xf32>
    %136 = arith.mulf %131, %135 : vector<4x256xf32>
    %137 = vector.extract_strided_slice %80 {offsets = [0, 17], sizes = [4, 239], strides = [1, 1]} : vector<4x256xf32> to vector<4x239xf32>
    %138 = vector.extract_strided_slice %80 {offsets = [0, 0], sizes = [4, 17], strides = [1, 1]} : vector<4x256xf32> to vector<4x17xf32>
    %139 = tpu.concatenate %137, %138 in 1 : vector<4x239xf32>, vector<4x17xf32> -> vector<4x256xf32>
    %c0_50 = arith.constant 0 : index
    %c8_51 = arith.constant 8 : index
    %c0_52 = arith.constant 0 : index
    %140 = vector.load %arg4[%c0_50, %c8_51, %c0_52] : memref<2x9x256xf32, #tpu.memory_space<vmem>>, vector<1x1x256xf32>
    %141 = vector.shape_cast %140 : vector<1x1x256xf32> to vector<256xf32>
    %142 = vector.shape_cast %141 : vector<256xf32> to vector<1x256xf32>
    %143 = vector.broadcast %142 : vector<1x256xf32> to vector<4x256xf32>
    %144 = arith.mulf %139, %143 : vector<4x256xf32>
    %145 = tpu.concatenate %88, %96, %104, %112, %80, %120, %128, %136, %144 in 0 : vector<4x256xf32>, vector<4x256xf32>, vector<4x256xf32>, vector<4x256xf32>, vector<4x256xf32>, vector<4x256xf32>, vector<4x256xf32>, vector<4x256xf32>, vector<4x256xf32> -> vector<36x256xf32>
    %cst_53 = arith.constant dense<0.000000e+00> : vector<4x256xf32>
    %146 = tpu.matmul %2, %145, %cst_53 {dimension_numbers = #tpu.dot_dimension_numbers<[1], [0], [0], [1], [0, 0, 1, 1], [], []>} : vector<4x36xf32>, vector<36x256xf32>, vector<4x256xf32> -> vector<4x256xf32>
    %147 = vector.extract_strided_slice %146 {offsets = [0, 222], sizes = [4, 34], strides = [1, 1]} : vector<4x256xf32> to vector<4x34xf32>
    %148 = vector.extract_strided_slice %146 {offsets = [0, 0], sizes = [4, 222], strides = [1, 1]} : vector<4x256xf32> to vector<4x222xf32>
    %149 = tpu.concatenate %147, %148 in 1 : vector<4x34xf32>, vector<4x222xf32> -> vector<4x256xf32>
    %c1_54 = arith.constant 1 : index
    %c0_55 = arith.constant 0 : index
    %c0_56 = arith.constant 0 : index
    %150 = vector.load %arg4[%c1_54, %c0_55, %c0_56] : memref<2x9x256xf32, #tpu.memory_space<vmem>>, vector<1x1x256xf32>
    %151 = vector.shape_cast %150 : vector<1x1x256xf32> to vector<256xf32>
    %152 = vector.shape_cast %151 : vector<256xf32> to vector<1x256xf32>
    %153 = vector.broadcast %152 : vector<1x256xf32> to vector<4x256xf32>
    %154 = arith.mulf %149, %153 : vector<4x256xf32>
    %155 = vector.extract_strided_slice %146 {offsets = [0, 224], sizes = [4, 32], strides = [1, 1]} : vector<4x256xf32> to vector<4x32xf32>
    %156 = vector.extract_strided_slice %146 {offsets = [0, 0], sizes = [4, 224], strides = [1, 1]} : vector<4x256xf32> to vector<4x224xf32>
    %157 = tpu.concatenate %155, %156 in 1 : vector<4x32xf32>, vector<4x224xf32> -> vector<4x256xf32>
    %c1_57 = arith.constant 1 : index
    %c1_58 = arith.constant 1 : index
    %c0_59 = arith.constant 0 : index
    %158 = vector.load %arg4[%c1_57, %c1_58, %c0_59] : memref<2x9x256xf32, #tpu.memory_space<vmem>>, vector<1x1x256xf32>
    %159 = vector.shape_cast %158 : vector<1x1x256xf32> to vector<256xf32>
    %160 = vector.shape_cast %159 : vector<256xf32> to vector<1x256xf32>
    %161 = vector.broadcast %160 : vector<1x256xf32> to vector<4x256xf32>
    %162 = arith.mulf %157, %161 : vector<4x256xf32>
    %163 = vector.extract_strided_slice %146 {offsets = [0, 226], sizes = [4, 30], strides = [1, 1]} : vector<4x256xf32> to vector<4x30xf32>
    %164 = vector.extract_strided_slice %146 {offsets = [0, 0], sizes = [4, 226], strides = [1, 1]} : vector<4x256xf32> to vector<4x226xf32>
    %165 = tpu.concatenate %163, %164 in 1 : vector<4x30xf32>, vector<4x226xf32> -> vector<4x256xf32>
    %c1_60 = arith.constant 1 : index
    %c2_61 = arith.constant 2 : index
    %c0_62 = arith.constant 0 : index
    %166 = vector.load %arg4[%c1_60, %c2_61, %c0_62] : memref<2x9x256xf32, #tpu.memory_space<vmem>>, vector<1x1x256xf32>
    %167 = vector.shape_cast %166 : vector<1x1x256xf32> to vector<256xf32>
    %168 = vector.shape_cast %167 : vector<256xf32> to vector<1x256xf32>
    %169 = vector.broadcast %168 : vector<1x256xf32> to vector<4x256xf32>
    %170 = arith.mulf %165, %169 : vector<4x256xf32>
    %171 = vector.extract_strided_slice %146 {offsets = [0, 254], sizes = [4, 2], strides = [1, 1]} : vector<4x256xf32> to vector<4x2xf32>
    %172 = vector.extract_strided_slice %146 {offsets = [0, 0], sizes = [4, 254], strides = [1, 1]} : vector<4x256xf32> to vector<4x254xf32>
    %173 = tpu.concatenate %171, %172 in 1 : vector<4x2xf32>, vector<4x254xf32> -> vector<4x256xf32>
    %c1_63 = arith.constant 1 : index
    %c3_64 = arith.constant 3 : index
    %c0_65 = arith.constant 0 : index
    %174 = vector.load %arg4[%c1_63, %c3_64, %c0_65] : memref<2x9x256xf32, #tpu.memory_space<vmem>>, vector<1x1x256xf32>
    %175 = vector.shape_cast %174 : vector<1x1x256xf32> to vector<256xf32>
    %176 = vector.shape_cast %175 : vector<256xf32> to vector<1x256xf32>
    %177 = vector.broadcast %176 : vector<1x256xf32> to vector<4x256xf32>
    %178 = arith.mulf %173, %177 : vector<4x256xf32>
    %179 = vector.extract_strided_slice %146 {offsets = [0, 2], sizes = [4, 254], strides = [1, 1]} : vector<4x256xf32> to vector<4x254xf32>
    %180 = vector.extract_strided_slice %146 {offsets = [0, 0], sizes = [4, 2], strides = [1, 1]} : vector<4x256xf32> to vector<4x2xf32>
    %181 = tpu.concatenate %179, %180 in 1 : vector<4x254xf32>, vector<4x2xf32> -> vector<4x256xf32>
    %c1_66 = arith.constant 1 : index
    %c5_67 = arith.constant 5 : index
    %c0_68 = arith.constant 0 : index
    %182 = vector.load %arg4[%c1_66, %c5_67, %c0_68] : memref<2x9x256xf32, #tpu.memory_space<vmem>>, vector<1x1x256xf32>
    %183 = vector.shape_cast %182 : vector<1x1x256xf32> to vector<256xf32>
    %184 = vector.shape_cast %183 : vector<256xf32> to vector<1x256xf32>
    %185 = vector.broadcast %184 : vector<1x256xf32> to vector<4x256xf32>
    %186 = arith.mulf %181, %185 : vector<4x256xf32>
    %187 = vector.extract_strided_slice %146 {offsets = [0, 30], sizes = [4, 226], strides = [1, 1]} : vector<4x256xf32> to vector<4x226xf32>
    %188 = vector.extract_strided_slice %146 {offsets = [0, 0], sizes = [4, 30], strides = [1, 1]} : vector<4x256xf32> to vector<4x30xf32>
    %189 = tpu.concatenate %187, %188 in 1 : vector<4x226xf32>, vector<4x30xf32> -> vector<4x256xf32>
    %c1_69 = arith.constant 1 : index
    %c6_70 = arith.constant 6 : index
    %c0_71 = arith.constant 0 : index
    %190 = vector.load %arg4[%c1_69, %c6_70, %c0_71] : memref<2x9x256xf32, #tpu.memory_space<vmem>>, vector<1x1x256xf32>
    %191 = vector.shape_cast %190 : vector<1x1x256xf32> to vector<256xf32>
    %192 = vector.shape_cast %191 : vector<256xf32> to vector<1x256xf32>
    %193 = vector.broadcast %192 : vector<1x256xf32> to vector<4x256xf32>
    %194 = arith.mulf %189, %193 : vector<4x256xf32>
    %195 = vector.extract_strided_slice %146 {offsets = [0, 32], sizes = [4, 224], strides = [1, 1]} : vector<4x256xf32> to vector<4x224xf32>
    %196 = vector.extract_strided_slice %146 {offsets = [0, 0], sizes = [4, 32], strides = [1, 1]} : vector<4x256xf32> to vector<4x32xf32>
    %197 = tpu.concatenate %195, %196 in 1 : vector<4x224xf32>, vector<4x32xf32> -> vector<4x256xf32>
    %c1_72 = arith.constant 1 : index
    %c7_73 = arith.constant 7 : index
    %c0_74 = arith.constant 0 : index
    %198 = vector.load %arg4[%c1_72, %c7_73, %c0_74] : memref<2x9x256xf32, #tpu.memory_space<vmem>>, vector<1x1x256xf32>
    %199 = vector.shape_cast %198 : vector<1x1x256xf32> to vector<256xf32>
    %200 = vector.shape_cast %199 : vector<256xf32> to vector<1x256xf32>
    %201 = vector.broadcast %200 : vector<1x256xf32> to vector<4x256xf32>
    %202 = arith.mulf %197, %201 : vector<4x256xf32>
    %203 = vector.extract_strided_slice %146 {offsets = [0, 34], sizes = [4, 222], strides = [1, 1]} : vector<4x256xf32> to vector<4x222xf32>
    %204 = vector.extract_strided_slice %146 {offsets = [0, 0], sizes = [4, 34], strides = [1, 1]} : vector<4x256xf32> to vector<4x34xf32>
    %205 = tpu.concatenate %203, %204 in 1 : vector<4x222xf32>, vector<4x34xf32> -> vector<4x256xf32>
    %c1_75 = arith.constant 1 : index
    %c8_76 = arith.constant 8 : index
    %c0_77 = arith.constant 0 : index
    %206 = vector.load %arg4[%c1_75, %c8_76, %c0_77] : memref<2x9x256xf32, #tpu.memory_space<vmem>>, vector<1x1x256xf32>
    %207 = vector.shape_cast %206 : vector<1x1x256xf32> to vector<256xf32>
    %208 = vector.shape_cast %207 : vector<256xf32> to vector<1x256xf32>
    %209 = vector.broadcast %208 : vector<1x256xf32> to vector<4x256xf32>
    %210 = arith.mulf %205, %209 : vector<4x256xf32>
    %211 = tpu.concatenate %154, %162, %170, %178, %146, %186, %194, %202, %210 in 0 : vector<4x256xf32>, vector<4x256xf32>, vector<4x256xf32>, vector<4x256xf32>, vector<4x256xf32>, vector<4x256xf32>, vector<4x256xf32>, vector<4x256xf32>, vector<4x256xf32> -> vector<36x256xf32>
    %cst_78 = arith.constant dense<0.000000e+00> : vector<4x256xf32>
    %212 = tpu.matmul %3, %211, %cst_78 {dimension_numbers = #tpu.dot_dimension_numbers<[1], [0], [0], [1], [0, 0, 1, 1], [], []>} : vector<4x36xf32>, vector<36x256xf32>, vector<4x256xf32> -> vector<4x256xf32>
    %213 = vector.extract_strided_slice %212 {offsets = [0, 239], sizes = [4, 17], strides = [1, 1]} : vector<4x256xf32> to vector<4x17xf32>
    %214 = vector.extract_strided_slice %212 {offsets = [0, 0], sizes = [4, 239], strides = [1, 1]} : vector<4x256xf32> to vector<4x239xf32>
    %215 = tpu.concatenate %213, %214 in 1 : vector<4x17xf32>, vector<4x239xf32> -> vector<4x256xf32>
    %c0_79 = arith.constant 0 : index
    %c0_80 = arith.constant 0 : index
    %c0_81 = arith.constant 0 : index
    %216 = vector.load %arg4[%c0_79, %c0_80, %c0_81] : memref<2x9x256xf32, #tpu.memory_space<vmem>>, vector<1x1x256xf32>
    %217 = vector.shape_cast %216 : vector<1x1x256xf32> to vector<256xf32>
    %218 = vector.shape_cast %217 : vector<256xf32> to vector<1x256xf32>
    %219 = vector.broadcast %218 : vector<1x256xf32> to vector<4x256xf32>
    %220 = arith.mulf %215, %219 : vector<4x256xf32>
    %221 = vector.extract_strided_slice %212 {offsets = [0, 240], sizes = [4, 16], strides = [1, 1]} : vector<4x256xf32> to vector<4x16xf32>
    %222 = vector.extract_strided_slice %212 {offsets = [0, 0], sizes = [4, 240], strides = [1, 1]} : vector<4x256xf32> to vector<4x240xf32>
    %223 = tpu.concatenate %221, %222 in 1 : vector<4x16xf32>, vector<4x240xf32> -> vector<4x256xf32>
    %c0_82 = arith.constant 0 : index
    %c1_83 = arith.constant 1 : index
    %c0_84 = arith.constant 0 : index
    %224 = vector.load %arg4[%c0_82, %c1_83, %c0_84] : memref<2x9x256xf32, #tpu.memory_space<vmem>>, vector<1x1x256xf32>
    %225 = vector.shape_cast %224 : vector<1x1x256xf32> to vector<256xf32>
    %226 = vector.shape_cast %225 : vector<256xf32> to vector<1x256xf32>
    %227 = vector.broadcast %226 : vector<1x256xf32> to vector<4x256xf32>
    %228 = arith.mulf %223, %227 : vector<4x256xf32>
    %229 = vector.extract_strided_slice %212 {offsets = [0, 241], sizes = [4, 15], strides = [1, 1]} : vector<4x256xf32> to vector<4x15xf32>
    %230 = vector.extract_strided_slice %212 {offsets = [0, 0], sizes = [4, 241], strides = [1, 1]} : vector<4x256xf32> to vector<4x241xf32>
    %231 = tpu.concatenate %229, %230 in 1 : vector<4x15xf32>, vector<4x241xf32> -> vector<4x256xf32>
    %c0_85 = arith.constant 0 : index
    %c2_86 = arith.constant 2 : index
    %c0_87 = arith.constant 0 : index
    %232 = vector.load %arg4[%c0_85, %c2_86, %c0_87] : memref<2x9x256xf32, #tpu.memory_space<vmem>>, vector<1x1x256xf32>
    %233 = vector.shape_cast %232 : vector<1x1x256xf32> to vector<256xf32>
    %234 = vector.shape_cast %233 : vector<256xf32> to vector<1x256xf32>
    %235 = vector.broadcast %234 : vector<1x256xf32> to vector<4x256xf32>
    %236 = arith.mulf %231, %235 : vector<4x256xf32>
    %237 = vector.extract_strided_slice %212 {offsets = [0, 255], sizes = [4, 1], strides = [1, 1]} : vector<4x256xf32> to vector<4x1xf32>
    %238 = vector.extract_strided_slice %212 {offsets = [0, 0], sizes = [4, 255], strides = [1, 1]} : vector<4x256xf32> to vector<4x255xf32>
    %239 = tpu.concatenate %237, %238 in 1 : vector<4x1xf32>, vector<4x255xf32> -> vector<4x256xf32>
    %c0_88 = arith.constant 0 : index
    %c3_89 = arith.constant 3 : index
    %c0_90 = arith.constant 0 : index
    %240 = vector.load %arg4[%c0_88, %c3_89, %c0_90] : memref<2x9x256xf32, #tpu.memory_space<vmem>>, vector<1x1x256xf32>
    %241 = vector.shape_cast %240 : vector<1x1x256xf32> to vector<256xf32>
    %242 = vector.shape_cast %241 : vector<256xf32> to vector<1x256xf32>
    %243 = vector.broadcast %242 : vector<1x256xf32> to vector<4x256xf32>
    %244 = arith.mulf %239, %243 : vector<4x256xf32>
    %245 = vector.extract_strided_slice %212 {offsets = [0, 1], sizes = [4, 255], strides = [1, 1]} : vector<4x256xf32> to vector<4x255xf32>
    %246 = vector.extract_strided_slice %212 {offsets = [0, 0], sizes = [4, 1], strides = [1, 1]} : vector<4x256xf32> to vector<4x1xf32>
    %247 = tpu.concatenate %245, %246 in 1 : vector<4x255xf32>, vector<4x1xf32> -> vector<4x256xf32>
    %c0_91 = arith.constant 0 : index
    %c5_92 = arith.constant 5 : index
    %c0_93 = arith.constant 0 : index
    %248 = vector.load %arg4[%c0_91, %c5_92, %c0_93] : memref<2x9x256xf32, #tpu.memory_space<vmem>>, vector<1x1x256xf32>
    %249 = vector.shape_cast %248 : vector<1x1x256xf32> to vector<256xf32>
    %250 = vector.shape_cast %249 : vector<256xf32> to vector<1x256xf32>
    %251 = vector.broadcast %250 : vector<1x256xf32> to vector<4x256xf32>
    %252 = arith.mulf %247, %251 : vector<4x256xf32>
    %253 = vector.extract_strided_slice %212 {offsets = [0, 15], sizes = [4, 241], strides = [1, 1]} : vector<4x256xf32> to vector<4x241xf32>
    %254 = vector.extract_strided_slice %212 {offsets = [0, 0], sizes = [4, 15], strides = [1, 1]} : vector<4x256xf32> to vector<4x15xf32>
    %255 = tpu.concatenate %253, %254 in 1 : vector<4x241xf32>, vector<4x15xf32> -> vector<4x256xf32>
    %c0_94 = arith.constant 0 : index
    %c6_95 = arith.constant 6 : index
    %c0_96 = arith.constant 0 : index
    %256 = vector.load %arg4[%c0_94, %c6_95, %c0_96] : memref<2x9x256xf32, #tpu.memory_space<vmem>>, vector<1x1x256xf32>
    %257 = vector.shape_cast %256 : vector<1x1x256xf32> to vector<256xf32>
    %258 = vector.shape_cast %257 : vector<256xf32> to vector<1x256xf32>
    %259 = vector.broadcast %258 : vector<1x256xf32> to vector<4x256xf32>
    %260 = arith.mulf %255, %259 : vector<4x256xf32>
    %261 = vector.extract_strided_slice %212 {offsets = [0, 16], sizes = [4, 240], strides = [1, 1]} : vector<4x256xf32> to vector<4x240xf32>
    %262 = vector.extract_strided_slice %212 {offsets = [0, 0], sizes = [4, 16], strides = [1, 1]} : vector<4x256xf32> to vector<4x16xf32>
    %263 = tpu.concatenate %261, %262 in 1 : vector<4x240xf32>, vector<4x16xf32> -> vector<4x256xf32>
    %c0_97 = arith.constant 0 : index
    %c7_98 = arith.constant 7 : index
    %c0_99 = arith.constant 0 : index
    %264 = vector.load %arg4[%c0_97, %c7_98, %c0_99] : memref<2x9x256xf32, #tpu.memory_space<vmem>>, vector<1x1x256xf32>
    %265 = vector.shape_cast %264 : vector<1x1x256xf32> to vector<256xf32>
    %266 = vector.shape_cast %265 : vector<256xf32> to vector<1x256xf32>
    %267 = vector.broadcast %266 : vector<1x256xf32> to vector<4x256xf32>
    %268 = arith.mulf %263, %267 : vector<4x256xf32>
    %269 = vector.extract_strided_slice %212 {offsets = [0, 17], sizes = [4, 239], strides = [1, 1]} : vector<4x256xf32> to vector<4x239xf32>
    %270 = vector.extract_strided_slice %212 {offsets = [0, 0], sizes = [4, 17], strides = [1, 1]} : vector<4x256xf32> to vector<4x17xf32>
    %271 = tpu.concatenate %269, %270 in 1 : vector<4x239xf32>, vector<4x17xf32> -> vector<4x256xf32>
    %c0_100 = arith.constant 0 : index
    %c8_101 = arith.constant 8 : index
    %c0_102 = arith.constant 0 : index
    %272 = vector.load %arg4[%c0_100, %c8_101, %c0_102] : memref<2x9x256xf32, #tpu.memory_space<vmem>>, vector<1x1x256xf32>
    %273 = vector.shape_cast %272 : vector<1x1x256xf32> to vector<256xf32>
    %274 = vector.shape_cast %273 : vector<256xf32> to vector<1x256xf32>
    %275 = vector.broadcast %274 : vector<1x256xf32> to vector<4x256xf32>
    %276 = arith.mulf %271, %275 : vector<4x256xf32>
    %277 = tpu.concatenate %220, %228, %236, %244, %212, %252, %260, %268, %276 in 0 : vector<4x256xf32>, vector<4x256xf32>, vector<4x256xf32>, vector<4x256xf32>, vector<4x256xf32>, vector<4x256xf32>, vector<4x256xf32>, vector<4x256xf32>, vector<4x256xf32> -> vector<36x256xf32>
    %cst_103 = arith.constant dense<0.000000e+00> : vector<4x256xf32>
    %278 = tpu.matmul %2, %277, %cst_103 {dimension_numbers = #tpu.dot_dimension_numbers<[1], [0], [0], [1], [0, 0, 1, 1], [], []>} : vector<4x36xf32>, vector<36x256xf32>, vector<4x256xf32> -> vector<4x256xf32>
    %279 = arith.addf %278, %80 : vector<4x256xf32>
    %cst_104 = arith.constant 0.000000e+00 : f32
    %280 = vector.broadcast %cst_104 : f32 to vector<4x256xf32>
    %281 = arith.cmpf oge, %279, %280 : vector<4x256xf32>
    %cst_105 = arith.constant 0.00999999977 : f32
    %282 = vector.broadcast %cst_105 : f32 to vector<4x256xf32>
    %283 = arith.mulf %282, %279 : vector<4x256xf32>
    %284 = arith.select %281, %279, %283 : vector<4x256xi1>, vector<4x256xf32>
    %c0_106 = arith.constant 0 : index
    %c0_107 = arith.constant 0 : index
    %c0_108 = arith.constant 0 : index
    %285 = vector.load %arg7[%c0_106, %c0_107, %c0_108] : memref<1x4x256xf32, #tpu.memory_space<vmem>>, vector<1x4x256xf32>
    %286 = vector.shape_cast %285 : vector<1x4x256xf32> to vector<4x256xf32>
    %287 = vector.shape_cast %284 : vector<4x256xf32> to vector<1x4x256xf32>
    tpu.vector_store %arg7[%c0_106, %c0_107, %c0_108], %287 {strides = array<i32>} : memref<1x4x256xf32, #tpu.memory_space<vmem>>, vector<1x4x256xf32>,
    return
  }
  func.func @transform_0(%arg0: i32) -> (i32, i32, i32) {
    %c0_i32 = arith.constant 0 : i32
    %c0_i32_0 = arith.constant 0 : i32
    %c0_i32_1 = arith.constant 0 : i32
    return %arg0, %c0_i32, %c0_i32_0 : i32, i32, i32
  }
  func.func @transform_1(%arg0: i32) -> (i32, i32) {
    %c0_i32 = arith.constant 0 : i32
    %c0_i32_0 = arith.constant 0 : i32
    %c0_i32_1 = arith.constant 0 : i32
    return %c0_i32, %c0_i32_0 : i32, i32
  }
  func.func @transform_2(%arg0: i32) -> (i32, i32) {
    %c0_i32 = arith.constant 0 : i32
    %c0_i32_0 = arith.constant 0 : i32
    %c0_i32_1 = arith.constant 0 : i32
    return %c0_i32, %c0_i32_0 : i32, i32
  }
  func.func @transform_3(%arg0: i32) -> (i32, i32, i32) {
    %c0_i32 = arith.constant 0 : i32
    %c0_i32_0 = arith.constant 0 : i32
    %c0_i32_1 = arith.constant 0 : i32
    %c0_i32_2 = arith.constant 0 : i32
    return %c0_i32, %c0_i32_0, %c0_i32_1 : i32, i32, i32
  }
  func.func @transform_4(%arg0: i32) -> (i32, i32) {
    %c0_i32 = arith.constant 0 : i32
    %c0_i32_0 = arith.constant 0 : i32
    %c0_i32_1 = arith.constant 0 : i32
    return %c0_i32, %c0_i32_0 : i32, i32
  }
  func.func @transform_5(%arg0: i32) -> (i32, i32) {
    %c0_i32 = arith.constant 0 : i32
    %c0_i32_0 = arith.constant 0 : i32
    %c0_i32_1 = arith.constant 0 : i32
    return %c0_i32, %c0_i32_0 : i32, i32
  }
  func.func @transform_6(%arg0: i32) -> (i32, i32, i32) {
    %c0_i32 = arith.constant 0 : i32
    %c0_i32_0 = arith.constant 0 : i32
    %c0_i32_1 = arith.constant 0 : i32
    return %arg0, %c0_i32, %c0_i32_0 : i32, i32, i32
  }
}

</mosaic_0001>

<llo_original>
// kernel: resblock1_forward.2
$region0: #{resblock1_forward.2}
  #allocation0 [shape = 'u32[]', space=smem, size = 0x4, offset = 0x4, fixed_abs, tag = 'smem constant byte address 0x4 - core index']
  #allocation1 [shape = 'u32[144,128]{1,0:T(1,128)}', space=vmem, size = 0x12000, scoped, tag = 'internal scratch']
  %s0 = inlined_call_operand.vmem [shape: f32[2,4,256], index: 0, kind: input, shape index: {}]
  %s1 = inlined_call_operand.vmem [shape: f32[4,36], index: 1, kind: input, shape index: {}]
  %s2 = inlined_call_operand.vmem [shape: f32[2,9,256], index: 2, kind: input, shape index: {}]
  %s3 = inlined_call_operand.vmem [shape: f32[2,4,2], index: 3, kind: output, shape index: {}]
  %s4 = sld [smem:[#allocation0]]
  $region45: #{resblock1_forward.2} parent=0
    _
  %s6 = ssub.s32 1, %s4
  %s7 = scalar_select 0, %s6, %s4
  loop: start=0, step=1, limit=4
  $region2: #{resblock1_forward.2} parent=0 // loop_pre_header
    _
  $region3: #{resblock1_forward.2} parent=0 // loop_header
    %s9 = sphi 0, %s13
    %p10 = scmp.ge.s32.totalorder %s9, 4
    %s19 = sphi 0, %s21
    %s22 = sphi 0, %s19
    %s23 = sphi 0, %s22
    %s39 = sphi 0, %s23
    %s43 = sphi 0, %s43
    %s45 = sphi 0, %s43
    %s46 = sphi 0, %s45
    %s60 = sphi 0, %s46
    %s64 = sphi 0, %s64
    %s66 = sphi 0, %s64
    %s67 = sphi 0, %s66
    %s81 = sphi 0, %s67
    %s87 = sphi 0, %s89
    %s90 = sphi 0, %s87
    %s91 = sphi 0, %s90
    %s107 = sphi 0, %s91
  $region4: #{resblock1_forward.2} parent=0 // loop_header_branch
    %12 = sbr.rel (%p10) target = $region8
  $region5: #{resblock1_forward.2} parent=0 // loop_body
    %s14 = ssub.s32 %s9, 1
    %s15 = ssub.s32 %s9, 2
    %s16 = sadd.s32 %s9, 1
    %s17 = ssub.s32 %s9, %s16
    %p18 = scmp.eq.s32.totalorder %s17, 0
    %s20 = sadd.s32 %s19, 1
    %s21 = scalar_select %p18, %s19, %s20
    %p24 = pneg %p18
    %p25 = scmp.eq.s32.totalorder %s9, 1
    %p26 = por %p24, %p25
    %p27 = scmp.ne.s32.totalorder %s19, %s22
    %p28 = scmp.eq.s32.totalorder %s9, 0
    %p29 = por %p27, %p28
    %p30 = scmp.ne.s32.totalorder %s19, %s22
    %p31 = scmp.eq.s32.totalorder %s14, 1
    %p32 = por %p30, %p31
    %p33 = scmp.ne.s32.totalorder %s22, %s23
    %p34 = scmp.eq.s32.totalorder %s14, 0
    %p35 = por %p33, %p34
    %p36 = scmp.ne.s32.totalorder %s22, %s23
    %p37 = scmp.eq.s32.totalorder %s15, 1
    %p38 = por %p36, %p37
    %p40 = scmp.ne.s32.totalorder %s23, %s39
    %p41 = scmp.eq.s32.totalorder %s15, 0
    %p42 = por %p40, %p41
    %s44 = sadd.s32 %s43, 1
    %p47 = scmp.eq.s32.totalorder %s9, 1
    %p48 = scmp.ne.s32.totalorder %s43, %s45
    %p49 = scmp.eq.s32.totalorder %s9, 0
    %p50 = por %p48, %p49
    %p51 = scmp.ne.s32.totalorder %s43, %s45
    %p52 = scmp.eq.s32.totalorder %s14, 1
    %p53 = por %p51, %p52
    %p54 = scmp.ne.s32.totalorder %s45, %s46
    %p55 = scmp.eq.s32.totalorder %s14, 0
    %p56 = por %p54, %p55
    %p57 = scmp.ne.s32.totalorder %s45, %s46
    %p58 = scmp.eq.s32.totalorder %s15, 1
    %p59 = por %p57, %p58
    %p61 = scmp.ne.s32.totalorder %s46, %s60
    %p62 = scmp.eq.s32.totalorder %s15, 0
    %p63 = por %p61, %p62
    %s65 = sadd.s32 %s64, 1
    %p68 = scmp.eq.s32.totalorder %s9, 1
    %p69 = scmp.ne.s32.totalorder %s64, %s66
    %p70 = scmp.eq.s32.totalorder %s9, 0
    %p71 = por %p69, %p70
    %p72 = scmp.ne.s32.totalorder %s64, %s66
    %p73 = scmp.eq.s32.totalorder %s14, 1
    %p74 = por %p72, %p73
    %p75 = scmp.ne.s32.totalorder %s66, %s67
    %p76 = scmp.eq.s32.totalorder %s14, 0
    %p77 = por %p75, %p76
    %p78 = scmp.ne.s32.totalorder %s66, %s67
    %p79 = scmp.eq.s32.totalorder %s15, 1
    %p80 = por %p78, %p79
    %p82 = scmp.ne.s32.totalorder %s67, %s81
    %p83 = scmp.eq.s32.totalorder %s15, 0
    %p84 = por %p82, %p83
    %s85 = ssub.s32 %s9, %s16
    %p86 = scmp.eq.s32.totalorder %s85, 0
    %s88 = sadd.s32 %s87, 1
    %s89 = scalar_select %p86, %s87, %s88
    %p92 = pneg %p86
    %p93 = scmp.eq.s32.totalorder %s9, 1
    %p94 = por %p92, %p93
    %p95 = scmp.ne.s32.totalorder %s87, %s90
    %p96 = scmp.eq.s32.totalorder %s9, 0
    %p97 = por %p95, %p96
    %p98 = scmp.ne.s32.totalorder %s87, %s90
    %p99 = scmp.eq.s32.totalorder %s14, 1
    %p100 = por %p98, %p99
    %p101 = scmp.ne.s32.totalorder %s90, %s91
    %p102 = scmp.eq.s32.totalorder %s14, 0
    %p103 = por %p101, %p102
    %p104 = scmp.ne.s32.totalorder %s90, %s91
    %p105 = scmp.eq.s32.totalorder %s15, 1
    %p106 = por %p104, %p105
    %p108 = scmp.ne.s32.totalorder %s91, %s107
    %p109 = scmp.eq.s32.totalorder %s15, 0
    %p110 = por %p108, %p109
    %p111 = scmp.le.s32.totalorder 1, %s9
    %p112 = scmp.lt.s32.totalorder %s9, 3
    %p113 = pnand %p111, %p112
    %p114 = pneg %p113
    // Predicated region
    $region9: #{resblock1_forward.2} parent=5 // pred_check
      _
    $region10: #{resblock1_forward.2} parent=5 // pred_check_branch
      %116 = sbr.rel (%p113) target = $region12
    $region11: #{resblock1_forward.2} parent=5 // pred_region
      %s117 = ssub.s32 %s9, 1
      // Predicated region
      $region13: #{resblock1_forward.2} parent=11 // pred_check
        %p118 = pneg %p56
      $region14: #{resblock1_forward.2} parent=11 // pred_check_branch
        %120 = sbr.rel (%p118) target = $region16
      $region15: #{resblock1_forward.2} parent=11 // pred_region
        _
      $region16: #{resblock1_forward.2} parent=11 // pred_fallthru
        _
      // Predicated region
      $region17: #{resblock1_forward.2} parent=11 // pred_check
        %p121 = pneg %p77
      $region18: #{resblock1_forward.2} parent=11 // pred_check_branch
        %123 = sbr.rel (%p121) target = $region20
      $region19: #{resblock1_forward.2} parent=11 // pred_region
        _
      $region20: #{resblock1_forward.2} parent=11 // pred_fallthru
        _
    $region12: #{resblock1_forward.2} parent=5 // pred_fallthru
      _
    %p124 = scmp.lt.s32.totalorder %s9, 2
    // Predicated region
    $region21: #{resblock1_forward.2} parent=5 // pred_check
      %p125 = pneg %p124
    $region22: #{resblock1_forward.2} parent=5 // pred_check_branch
      %127 = sbr.rel (%p125) target = $region24
    $region23: #{resblock1_forward.2} parent=5 // pred_region
      // Predicated region
      $region25: #{resblock1_forward.2} parent=23 // pred_check
        %p128 = pneg %p29
      $region26: #{resblock1_forward.2} parent=23 // pred_check_branch
        %130 = sbr.rel (%p128) target = $region28
      $region27: #{resblock1_forward.2} parent=23 // pred_region
        %p131 = scmp.lt.s32.totalorder %s9, 1
        %s132 = scalar_select %p131, %s9, 1
        %s133 = smul.addr %s132, 2
        %s134 = smul.addr %s133, 4
        %s135 = scalar_lea.vmem %s0, %s134
      $region28: #{resblock1_forward.2} parent=23 // pred_fallthru
        _
    $region24: #{resblock1_forward.2} parent=5 // pred_fallthru
      _
    %p136 = scmp.le.s32.totalorder 1, %s9
    %p137 = scmp.lt.s32.totalorder %s9, 3
    %p138 = pnand %p136, %p137
    %p139 = pneg %p138
    // Predicated region
    $region29: #{resblock1_forward.2} parent=5 // pred_check
      _
    $region30: #{resblock1_forward.2} parent=5 // pred_check_branch
      %141 = sbr.rel (%p138) target = $region32
    $region31: #{resblock1_forward.2} parent=5 // pred_region
      %s142 = ssub.s32 %s9, 1
      %p143 = scmp.lt.s32.totalorder %s14, 1
      %s144 = scalar_select %p143, %s14, 1
      %s145 = smul.addr %s144, 2
      %s146 = smul.addr %s145, 4
      %s147 = scalar_lea.vmem %s0, %s146
      %p148 = pneg %p35
      %p149 = pneg %p32
      %p150 = pneg %p56
      %p151 = pneg %p53
      %p152 = pneg %p77
      %p153 = pneg %p74
      %p154 = pneg %p103
      %p155 = pneg %p100
      %p156 = scmp.lt.s32.totalorder %s14, 1
      %s157 = scalar_select %p156, %s14, 1
      %s158 = smul.addr %s157, 4
      %s159 = scalar_lea.vmem %s3, %s158
      %p160 = scmp.lt.s32.totalorder %s14, 1
      %s161 = scalar_select %p160, %s14, 1
      %s162 = smul.addr %s161, 2
      %s163 = smul.addr %s162, 4
      %s164 = scalar_lea.vmem %s0, %s163
      %p165 = scmp.lt.s32.totalorder %s14, 1
      %s166 = scalar_select %p165, %s14, 1
      %s167 = smul.addr %s166, 4
      %s168 = scalar_lea.vmem %s3, %s167
      %v169 = vld [vmem:[%s164] sm:$0xff]
      %v170 = vld [vmem:[%s1] sm:$0xf]
      %v172 = vcombine.high %v169, %v169
      %173 = vrot.lane.b32.xlu0 %v172, 17
      %v174 = vpop.permute.xlu0 %173
      %176 = vrot.lane.b32.xlu0 %v169, 17
      %v177 = vpop.permute.xlu0 %176
      %vm178 = vcmask 138240
      %v179 = vsel %vm178, %v177, %v174
      %v182 = vsel %vm178, %v174, %v177
      %v183 = vld [vmem:[%s2] ss:$8 sm:$0x3]
      %v185 = vlaneseq
      %v186 = vshrl.u32 %v185, 7
      %v187 = vsub.s32 0, %v186
      %v188 = vrot.slane %v183, %v187
      %v189 = vlaneseq
      %v190 = vshrl.u32 %v189, 7
      %v191 = vsub.s32 1, %v190
      %v192 = vrot.slane %v183, %v191
      %v195 = vmul.f32 %v182, %v188
      %v196 = vmul.f32 %v179, %v192
      %197 = vrot.lane.b32.xlu0 %v172, 16
      %v198 = vpop.permute.xlu0 %197
      %200 = vrot.lane.b32.xlu0 %v169, 16
      %v201 = vpop.permute.xlu0 %200
      %vm202 = vcmask 130048
      %v203 = vsel %vm202, %v201, %v198
      %v206 = vsel %vm202, %v198, %v201
      %s207 = scalar_lea.vmem %s2, 1
      %v208 = vld [vmem:[%s207] ss:$8 sm:$0x3]
      %v210 = vlaneseq
      %v211 = vshrl.u32 %v210, 7
      %v212 = vsub.s32 0, %v211
      %v213 = vrot.slane %v208, %v212
      %v214 = vlaneseq
      %v215 = vshrl.u32 %v214, 7
      %v216 = vsub.s32 1, %v215
      %v217 = vrot.slane %v208, %v216
      %v220 = vmul.f32 %v206, %v213
      %v221 = vmul.f32 %v203, %v217
      %222 = vrot.lane.b32.xlu0 %v172, 15
      %v223 = vpop.permute.xlu0 %222
      %225 = vrot.lane.b32.xlu0 %v169, 15
      %v226 = vpop.permute.xlu0 %225
      %vm227 = vcmask 121856
      %v228 = vsel %vm227, %v226, %v223
      %v231 = vsel %vm227, %v223, %v226
      %s232 = scalar_lea.vmem %s2, 2
      %v233 = vld [vmem:[%s232] ss:$8 sm:$0x3]
      %v235 = vlaneseq
      %v236 = vshrl.u32 %v235, 7
      %v237 = vsub.s32 0, %v236
      %v238 = vrot.slane %v233, %v237
      %v239 = vlaneseq
      %v240 = vshrl.u32 %v239, 7
      %v241 = vsub.s32 1, %v240
      %v242 = vrot.slane %v233, %v241
      %v245 = vmul.f32 %v231, %v238
      %v246 = vmul.f32 %v228, %v242
      %247 = vrot.lane.b32.xlu0 %v172, 1
      %v248 = vpop.permute.xlu0 %247
      %250 = vrot.lane.b32.xlu0 %v169, 1
      %v251 = vpop.permute.xlu0 %250
      %vm252 = vcmask 7168
      %v253 = vsel %vm252, %v251, %v248
      %v256 = vsel %vm252, %v248, %v251
      %s257 = scalar_lea.vmem %s2, 3
      %v258 = vld [vmem:[%s257] ss:$8 sm:$0x3]
      %v260 = vlaneseq
      %v261 = vshrl.u32 %v260, 7
      %v262 = vsub.s32 0, %v261
      %v263 = vrot.slane %v258, %v262
      %v264 = vlaneseq
      %v265 = vshrl.u32 %v264, 7
      %v266 = vsub.s32 1, %v265
      %v267 = vrot.slane %v258, %v266
      %v270 = vmul.f32 %v256, %v263
      %v271 = vmul.f32 %v253, %v267
      %272 = vrot.lane.b32.xlu0 %v169, 127
      %v273 = vpop.permute.xlu0 %272
      %274 = vrot.lane.b32.xlu0 %v172, 127
      %v275 = vpop.permute.xlu0 %274
      %vm276 = vcmask 1039360
      %v277 = vsel %vm276, %v273, %v275
      %v281 = vsel %vm276, %v275, %v273
      %s282 = scalar_lea.vmem %s2, 5
      %v283 = vld [vmem:[%s282] ss:$8 sm:$0x3]
      %v285 = vlaneseq
      %v286 = vshrl.u32 %v285, 7
      %v287 = vsub.s32 0, %v286
      %v288 = vrot.slane %v283, %v287
      %v289 = vlaneseq
      %v290 = vshrl.u32 %v289, 7
      %v291 = vsub.s32 1, %v290
      %v292 = vrot.slane %v283, %v291
      %v295 = vmul.f32 %v277, %v288
      %v296 = vmul.f32 %v281, %v292
      %297 = vrot.lane.b32.xlu0 %v169, 113
      %v298 = vpop.permute.xlu0 %297
      %299 = vrot.lane.b32.xlu0 %v172, 113
      %v300 = vpop.permute.xlu0 %299
      %vm301 = vcmask 924672
      %v302 = vsel %vm301, %v298, %v300
      %v306 = vsel %vm301, %v300, %v298
      %s307 = scalar_lea.vmem %s2, 6
      %v308 = vld [vmem:[%s307] ss:$8 sm:$0x3]
      %v310 = vlaneseq
      %v311 = vshrl.u32 %v310, 7
      %v312 = vsub.s32 0, %v311
      %v313 = vrot.slane %v308, %v312
      %v314 = vlaneseq
      %v315 = vshrl.u32 %v314, 7
      %v316 = vsub.s32 1, %v315
      %v317 = vrot.slane %v308, %v316
      %v320 = vmul.f32 %v302, %v313
      %v321 = vmul.f32 %v306, %v317
      %322 = vrot.lane.b32.xlu0 %v169, 112
      %v323 = vpop.permute.xlu0 %322
      %324 = vrot.lane.b32.xlu0 %v172, 112
      %v325 = vpop.permute.xlu0 %324
      %vm326 = vcmask 916480
      %v327 = vsel %vm326, %v323, %v325
      %v331 = vsel %vm326, %v325, %v323
      %s332 = scalar_lea.vmem %s2, 7
      %v333 = vld [vmem:[%s332] ss:$8 sm:$0x3]
      %v335 = vlaneseq
      %v336 = vshrl.u32 %v335, 7
      %v337 = vsub.s32 0, %v336
      %v338 = vrot.slane %v333, %v337
      %v339 = vlaneseq
      %v340 = vshrl.u32 %v339, 7
      %v341 = vsub.s32 1, %v340
      %v342 = vrot.slane %v333, %v341
      %v345 = vmul.f32 %v327, %v338
      %v346 = vmul.f32 %v331, %v342
      %347 = vrot.lane.b32.xlu0 %v169, 111
      %v348 = vpop.permute.xlu0 %347
      %349 = vrot.lane.b32.xlu0 %v172, 111
      %v350 = vpop.permute.xlu0 %349
      %vm351 = vcmask 908288
      %v352 = vsel %vm351, %v348, %v350
      %v356 = vsel %vm351, %v350, %v348
      %s357 = scalar_lea.vmem %s2, 16
      %v358 = vld [vmem:[%s357] ss:$8 sm:$0x3]
      %v360 = vlaneseq
      %v361 = vshrl.u32 %v360, 7
      %v362 = vsub.s32 0, %v361
      %v363 = vrot.slane %v358, %v362
      %v364 = vlaneseq
      %v365 = vshrl.u32 %v364, 7
      %v366 = vsub.s32 1, %v365
      %v367 = vrot.slane %v358, %v366
      %v370 = vmul.f32 %v352, %v363
      %v371 = vmul.f32 %v356, %v367
      %v374 = vrot.slane %v220, 4
      %v375 = vrot.slane %v221, 4
      %v380 = vrot.slane %v270, 4
      %v381 = vrot.slane %v271, 4
      %v387 = vrot.slane %v295, 4
      %v388 = vrot.slane %v296, 4
      %v393 = vrot.slane %v345, 4
      %v394 = vrot.slane %v346, 4
      %vm397 = vcmask 1043456
      %v398 = vsel %vm397, %v195, %v374
      %v399 = vsel %vm397, %v196, %v375
      %v400 = vsel %vm397, %v245, %v380
      %v401 = vsel %vm397, %v246, %v381
      %v402 = vsel %vm397, %v169, %v387
      %v403 = vsel %vm397, %v172, %v388
      %v404 = vsel %vm397, %v320, %v393
      %v405 = vsel %vm397, %v321, %v394
      %vm406 = vcmask 293888
      %v408 = vsel %vm406, %v170, 0
      %v411 = vsel %vm397, %v370, 0
      %v414 = vsel %vm397, %v371, 0
      %416 = vmatprep.subr.mxu0 %v399
      %417 = vmatpush1.msra.mxu0 %v398
      %418 = vmatprep.subr.mxu0 %v401
      %419 = vmatpush1.msra.mxu0 %v400
      %420 = vmatprep.subr.mxu0 %v403
      %421 = vmatpush1.msra.mxu0 %v402
      %422 = vmatprep.subr.mxu0 %v405
      %423 = vmatpush1.msra.mxu0 %v404
      %424 = vmatprep.subr.mxu0 %v414
      %425 = vmatpush1.msra.mxu0 %v411
      %426 = vmatprep.subr.mxu0 0.0
      %427 = vmatpush1.msra.mxu0 0.0
      %428 = vmatprep.subr.mxu0 0.0
      %429 = vmatpush1.msra.mxu0 0.0
      %430 = vmatprep.subr.mxu0 0.0
      %431 = vmatpush1.msra.mxu0 0.0
      %432 = vmatprep.subr.mxu0 0.0
      %433 = vmatpush1.msra.mxu0 0.0
      %434 = vmatprep.subr.mxu0 0.0
      %435 = vmatpush1.msra.mxu0 0.0
      %436 = vmatprep.subr.mxu0 0.0
      %437 = vmatpush1.msra.mxu0 0.0
      %438 = vmatprep.subr.mxu0 0.0
      %439 = vmatpush1.msra.mxu0 0.0
      %440 = vmatprep.subr.mxu0 0.0
      %441 = vmatpush1.msra.mxu0 0.0
      %442 = vmatprep.subr.mxu0 0.0
      %443 = vmatpush1.msra.mxu0 0.0
      %444 = vmatprep.subr.mxu0 0.0
      %445 = vmatpush1.msra.mxu0 0.0
      %446 = vmatprep.subr.mxu0 0.0
      %447 = vmatpush1.msra.mxu0 0.0
      %448 = vmatprep.subr.mxu0 0.0
      %449 = vmatpush1.msra.mxu0 0.0
      %450 = vmatprep.subr.mxu0 0.0
      %451 = vmatpush1.msra.mxu0 0.0
      %452 = vmatprep.subr.mxu0 0.0
      %453 = vmatpush1.msra.mxu0 0.0
      %454 = vmatprep.subr.mxu0 0.0
      %455 = vmatpush1.msra.mxu0 0.0
      %456 = vmatprep.subr.mxu0 0.0
      %457 = vmatpush1.msra.mxu0 0.0
      %458 = vmatprep.subr.mxu0 0.0
      %459 = vmatpush1.msra.mxu0 0.0
      %460 = vmatprep.subr.mxu0 0.0
      %461 = vmatpush1.msra.mxu0 0.0
      %462 = vmatprep.subr.mxu0 0.0
      %463 = vmatpush1.msra.mxu0 0.0
      %464 = vmatprep.subr.mxu0 0.0
      %465 = vmatpush1.msra.mxu0 0.0
      %466 = vmatprep.subr.mxu0 0.0
      %467 = vmatpush1.msra.mxu0 0.0
      %468 = vmatprep.subr.mxu0 0.0
      %469 = vmatpush1.msra.mxu0 0.0
      %470 = vmatprep.subr.mxu0 0.0
      %471 = vmatpush1.msra.mxu0 0.0
      %472 = vmatprep.subr.mxu0 0.0
      %473 = vmatpush1.msra.mxu0 0.0
      %474 = vmatprep.subr.mxu0 0.0
      %475 = vmatpush1.msra.mxu0 0.0
      %476 = vmatprep.subr.mxu0 0.0
      %477 = vmatpush1.msra.mxu0 0.0
      %478 = vmatprep.subr.mxu0 0.0
      %479 = vmatpush1.msra.mxu0 0.0
      %480 = vmatprep.mubr.f32.mxu0 0.0
      %481 = vmatmul.mubr.f32.gmra.mrb[0].mxu0 %v408
      %v482 = vpop.f32.mrb[0].mxu0
      %v483 = vadd.f32 0.0, %v482
      %v484 = vpop.f32.mrb[0].mxu0
      %v485 = vadd.f32 0.0, %v484
      %486 = vdwg.mxu0
      %v487 = vsel %vm397, %v483, 0.0
      %v488 = vsel %vm397, %v485, 0.0
      %v489 = vadd.f32 %v487, %v488
      %490 = vadd.xlane.f32.xlu0 %v489
      %v491 = vpop.xlane.xlu0 %490
      %v492 = vmul.f32 %v483, %v483
      %v493 = vmul.f32 %v485, %v485
      %v494 = vsel %vm397, %v492, 0.0
      %v495 = vsel %vm397, %v493, 0.0
      %v496 = vadd.f32 %v494, %v495
      %497 = vadd.xlane.f32.xlu0 %v496
      %v498 = vpop.xlane.xlu0 %497
      %v499 = vsel %vm252, %v491, %v498
      %vm500 = vcmask 11264
      %501 = vst.msk [vmem:[%s168] sm:$0xf] %vm500, %v499
      %p502 = scmp.lt.s32.totalorder %s14, 1
      %s503 = scalar_select %p502, %s14, 1
      %s504 = smul.addr %s503, 4
      %s505 = scalar_lea.vmem %s3, %s504
      // Predicated region
      $region33: #{resblock1_forward.2} parent=31 // pred_check
        %p506 = pneg %p100
      $region34: #{resblock1_forward.2} parent=31 // pred_check_branch
        %508 = sbr.rel (%p506) target = $region36
      $region35: #{resblock1_forward.2} parent=31 // pred_region
        _
      $region36: #{resblock1_forward.2} parent=31 // pred_fallthru
        _
    $region32: #{resblock1_forward.2} parent=5 // pred_fallthru
      _
    %p509 = scmp.le.s32.totalorder 2, %s9
    // Predicated region
    $region37: #{resblock1_forward.2} parent=5 // pred_check
      %p510 = pneg %p509
    $region38: #{resblock1_forward.2} parent=5 // pred_check_branch
      %512 = sbr.rel (%p510) target = $region40
    $region39: #{resblock1_forward.2} parent=5 // pred_region
      %s513 = ssub.s32 %s9, 2
      // Predicated region
      $region41: #{resblock1_forward.2} parent=39 // pred_check
        %p514 = pneg %p106
      $region42: #{resblock1_forward.2} parent=39 // pred_check_branch
        %516 = sbr.rel (%p514) target = $region44
      $region43: #{resblock1_forward.2} parent=39 // pred_region
        %p517 = scmp.lt.s32.totalorder %s15, 1
        %s518 = scalar_select %p517, %s15, 1
        %s519 = smul.addr %s518, 4
        %s520 = scalar_lea.vmem %s3, %s519
      $region44: #{resblock1_forward.2} parent=39 // pred_fallthru
        _
    $region40: #{resblock1_forward.2} parent=5 // pred_fallthru
      _
  $region6: #{resblock1_forward.2} parent=0 // loop_footer
    %s13 = sadd.s32 1, %s9
  $region7: #{resblock1_forward.2} parent=0 // loop_footer_branch
    %8 = sbr.rel target = $region3
  $region8: #{resblock1_forward.2} parent=0 // loop_exit
    _

// kernel: resblock1_forward.3
$region0: #{resblock1_forward.3}
  #allocation0 [shape = 'u32[]', space=smem, size = 0x4, offset = 0x4, fixed_abs, tag = 'smem constant byte address 0x4 - core index']
  #allocation1 [shape = 'u32[144,128]{1,0:T(1,128)}', space=vmem, size = 0x12000, scoped, tag = 'internal scratch']
  %s0 = inlined_call_operand.vmem [shape: f32[2,4,256], index: 0, kind: input, shape index: {}]
  %s1 = inlined_call_operand.vmem [shape: f32[4,36], index: 1, kind: input, shape index: {}]
  %s2 = inlined_call_operand.vmem [shape: f32[4,36], index: 2, kind: input, shape index: {}]
  %s3 = inlined_call_operand.vmem [shape: f32[2,9,256], index: 3, kind: input, shape index: {}]
  %s4 = inlined_call_operand.vmem [shape: f32[4,1], index: 4, kind: input, shape index: {}]
  %s5 = inlined_call_operand.vmem [shape: f32[4,1], index: 5, kind: input, shape index: {}]
  %s6 = inlined_call_operand.vmem [shape: f32[2,4,256], index: 6, kind: output, shape index: {}]
  %s7 = sld [smem:[#allocation0]]
  $region57: #{resblock1_forward.3} parent=0
    _
  %s9 = ssub.s32 1, %s7
  %s10 = scalar_select 0, %s9, %s7
  loop: start=0, step=1, limit=4
  $region2: #{resblock1_forward.3} parent=0 // loop_pre_header
    _
  $region3: #{resblock1_forward.3} parent=0 // loop_header
    %s12 = sphi 0, %s16
    %p13 = scmp.ge.s32.totalorder %s12, 4
    %s22 = sphi 0, %s24
    %s25 = sphi 0, %s22
    %s26 = sphi 0, %s25
    %s42 = sphi 0, %s26
    %s46 = sphi 0, %s46
    %s48 = sphi 0, %s46
    %s49 = sphi 0, %s48
    %s63 = sphi 0, %s49
    %s67 = sphi 0, %s67
    %s69 = sphi 0, %s67
    %s70 = sphi 0, %s69
    %s84 = sphi 0, %s70
    %s88 = sphi 0, %s88
    %s90 = sphi 0, %s88
    %s91 = sphi 0, %s90
    %s105 = sphi 0, %s91
    %s109 = sphi 0, %s109
    %s111 = sphi 0, %s109
    %s112 = sphi 0, %s111
    %s126 = sphi 0, %s112
    %s130 = sphi 0, %s130
    %s132 = sphi 0, %s130
    %s133 = sphi 0, %s132
    %s147 = sphi 0, %s133
    %s153 = sphi 0, %s155
    %s156 = sphi 0, %s153
    %s157 = sphi 0, %s156
    %s173 = sphi 0, %s157
  $region4: #{resblock1_forward.3} parent=0 // loop_header_branch
    %15 = sbr.rel (%p13) target = $region8
  $region5: #{resblock1_forward.3} parent=0 // loop_body
    %s17 = ssub.s32 %s12, 1
    %s18 = ssub.s32 %s12, 2
    %s19 = sadd.s32 %s12, 1
    %s20 = ssub.s32 %s12, %s19
    %p21 = scmp.eq.s32.totalorder %s20, 0
    %s23 = sadd.s32 %s22, 1
    %s24 = scalar_select %p21, %s22, %s23
    %p27 = pneg %p21
    %p28 = scmp.eq.s32.totalorder %s12, 1
    %p29 = por %p27, %p28
    %p30 = scmp.ne.s32.totalorder %s22, %s25
    %p31 = scmp.eq.s32.totalorder %s12, 0
    %p32 = por %p30, %p31
    %p33 = scmp.ne.s32.totalorder %s22, %s25
    %p34 = scmp.eq.s32.totalorder %s17, 1
    %p35 = por %p33, %p34
    %p36 = scmp.ne.s32.totalorder %s25, %s26
    %p37 = scmp.eq.s32.totalorder %s17, 0
    %p38 = por %p36, %p37
    %p39 = scmp.ne.s32.totalorder %s25, %s26
    %p40 = scmp.eq.s32.totalorder %s18, 1
    %p41 = por %p39, %p40
    %p43 = scmp.ne.s32.totalorder %s26, %s42
    %p44 = scmp.eq.s32.totalorder %s18, 0
    %p45 = por %p43, %p44
    %s47 = sadd.s32 %s46, 1
    %p50 = scmp.eq.s32.totalorder %s12, 1
    %p51 = scmp.ne.s32.totalorder %s46, %s48
    %p52 = scmp.eq.s32.totalorder %s12, 0
    %p53 = por %p51, %p52
    %p54 = scmp.ne.s32.totalorder %s46, %s48
    %p55 = scmp.eq.s32.totalorder %s17, 1
    %p56 = por %p54, %p55
    %p57 = scmp.ne.s32.totalorder %s48, %s49
    %p58 = scmp.eq.s32.totalorder %s17, 0
    %p59 = por %p57, %p58
    %p60 = scmp.ne.s32.totalorder %s48, %s49
    %p61 = scmp.eq.s32.totalorder %s18, 1
    %p62 = por %p60, %p61
    %p64 = scmp.ne.s32.totalorder %s49, %s63
    %p65 = scmp.eq.s32.totalorder %s18, 0
    %p66 = por %p64, %p65
    %s68 = sadd.s32 %s67, 1
    %p71 = scmp.eq.s32.totalorder %s12, 1
    %p72 = scmp.ne.s32.totalorder %s67, %s69
    %p73 = scmp.eq.s32.totalorder %s12, 0
    %p74 = por %p72, %p73
    %p75 = scmp.ne.s32.totalorder %s67, %s69
    %p76 = scmp.eq.s32.totalorder %s17, 1
    %p77 = por %p75, %p76
    %p78 = scmp.ne.s32.totalorder %s69, %s70
    %p79 = scmp.eq.s32.totalorder %s17, 0
    %p80 = por %p78, %p79
    %p81 = scmp.ne.s32.totalorder %s69, %s70
    %p82 = scmp.eq.s32.totalorder %s18, 1
    %p83 = por %p81, %p82
    %p85 = scmp.ne.s32.totalorder %s70, %s84
    %p86 = scmp.eq.s32.totalorder %s18, 0
    %p87 = por %p85, %p86
    %s89 = sadd.s32 %s88, 1
    %p92 = scmp.eq.s32.totalorder %s12, 1
    %p93 = scmp.ne.s32.totalorder %s88, %s90
    %p94 = scmp.eq.s32.totalorder %s12, 0
    %p95 = por %p93, %p94
    %p96 = scmp.ne.s32.totalorder %s88, %s90
    %p97 = scmp.eq.s32.totalorder %s17, 1
    %p98 = por %p96, %p97
    %p99 = scmp.ne.s32.totalorder %s90, %s91
    %p100 = scmp.eq.s32.totalorder %s17, 0
    %p101 = por %p99, %p100
    %p102 = scmp.ne.s32.totalorder %s90, %s91
    %p103 = scmp.eq.s32.totalorder %s18, 1
    %p104 = por %p102, %p103
    %p106 = scmp.ne.s32.totalorder %s91, %s105
    %p107 = scmp.eq.s32.totalorder %s18, 0
    %p108 = por %p106, %p107
    %s110 = sadd.s32 %s109, 1
    %p113 = scmp.eq.s32.totalorder %s12, 1
    %p114 = scmp.ne.s32.totalorder %s109, %s111
    %p115 = scmp.eq.s32.totalorder %s12, 0
    %p116 = por %p114, %p115
    %p117 = scmp.ne.s32.totalorder %s109, %s111
    %p118 = scmp.eq.s32.totalorder %s17, 1
    %p119 = por %p117, %p118
    %p120 = scmp.ne.s32.totalorder %s111, %s112
    %p121 = scmp.eq.s32.totalorder %s17, 0
    %p122 = por %p120, %p121
    %p123 = scmp.ne.s32.totalorder %s111, %s112
    %p124 = scmp.eq.s32.totalorder %s18, 1
    %p125 = por %p123, %p124
    %p127 = scmp.ne.s32.totalorder %s112, %s126
    %p128 = scmp.eq.s32.totalorder %s18, 0
    %p129 = por %p127, %p128
    %s131 = sadd.s32 %s130, 1
    %p134 = scmp.eq.s32.totalorder %s12, 1
    %p135 = scmp.ne.s32.totalorder %s130, %s132
    %p136 = scmp.eq.s32.totalorder %s12, 0
    %p137 = por %p135, %p136
    %p138 = scmp.ne.s32.totalorder %s130, %s132
    %p139 = scmp.eq.s32.totalorder %s17, 1
    %p140 = por %p138, %p139
    %p141 = scmp.ne.s32.totalorder %s132, %s133
    %p142 = scmp.eq.s32.totalorder %s17, 0
    %p143 = por %p141, %p142
    %p144 = scmp.ne.s32.totalorder %s132, %s133
    %p145 = scmp.eq.s32.totalorder %s18, 1
    %p146 = por %p144, %p145
    %p148 = scmp.ne.s32.totalorder %s133, %s147
    %p149 = scmp.eq.s32.totalorder %s18, 0
    %p150 = por %p148, %p149
    %s151 = ssub.s32 %s12, %s19
    %p152 = scmp.eq.s32.totalorder %s151, 0
    %s154 = sadd.s32 %s153, 1
    %s155 = scalar_select %p152, %s153, %s154
    %p158 = pneg %p152
    %p159 = scmp.eq.s32.totalorder %s12, 1
    %p160 = por %p158, %p159
    %p161 = scmp.ne.s32.totalorder %s153, %s156
    %p162 = scmp.eq.s32.totalorder %s12, 0
    %p163 = por %p161, %p162
    %p164 = scmp.ne.s32.totalorder %s153, %s156
    %p165 = scmp.eq.s32.totalorder %s17, 1
    %p166 = por %p164, %p165
    %p167 = scmp.ne.s32.totalorder %s156, %s157
    %p168 = scmp.eq.s32.totalorder %s17, 0
    %p169 = por %p167, %p168
    %p170 = scmp.ne.s32.totalorder %s156, %s157
    %p171 = scmp.eq.s32.totalorder %s18, 1
    %p172 = por %p170, %p171
    %p174 = scmp.ne.s32.totalorder %s157, %s173
    %p175 = scmp.eq.s32.totalorder %s18, 0
    %p176 = por %p174, %p175
    %p177 = scmp.le.s32.totalorder 1, %s12
    %p178 = scmp.lt.s32.totalorder %s12, 3
    %p179 = pnand %p177, %p178
    %p180 = pneg %p179
    // Predicated region
    $region9: #{resblock1_forward.3} parent=5 // pred_check
      _
    $region10: #{resblock1_forward.3} parent=5 // pred_check_branch
      %182 = sbr.rel (%p179) target = $region12
    $region11: #{resblock1_forward.3} parent=5 // pred_region
      %s183 = ssub.s32 %s12, 1
      // Predicated region
      $region13: #{resblock1_forward.3} parent=11 // pred_check
        %p184 = pneg %p59
      $region14: #{resblock1_forward.3} parent=11 // pred_check_branch
        %186 = sbr.rel (%p184) target = $region16
      $region15: #{resblock1_forward.3} parent=11 // pred_region
        _
      $region16: #{resblock1_forward.3} parent=11 // pred_fallthru
        _
      // Predicated region
      $region17: #{resblock1_forward.3} parent=11 // pred_check
        %p187 = pneg %p80
      $region18: #{resblock1_forward.3} parent=11 // pred_check_branch
        %189 = sbr.rel (%p187) target = $region20
      $region19: #{resblock1_forward.3} parent=11 // pred_region
        _
      $region20: #{resblock1_forward.3} parent=11 // pred_fallthru
        _
      // Predicated region
      $region21: #{resblock1_forward.3} parent=11 // pred_check
        %p190 = pneg %p101
      $region22: #{resblock1_forward.3} parent=11 // pred_check_branch
        %192 = sbr.rel (%p190) target = $region24
      $region23: #{resblock1_forward.3} parent=11 // pred_region
        _
      $region24: #{resblock1_forward.3} parent=11 // pred_fallthru
        _
      // Predicated region
      $region25: #{resblock1_forward.3} parent=11 // pred_check
        %p193 = pneg %p122
      $region26: #{resblock1_forward.3} parent=11 // pred_check_branch
        %195 = sbr.rel (%p193) target = $region28
      $region27: #{resblock1_forward.3} parent=11 // pred_region
        _
      $region28: #{resblock1_forward.3} parent=11 // pred_fallthru
        _
      // Predicated region
      $region29: #{resblock1_forward.3} parent=11 // pred_check
        %p196 = pneg %p143
      $region30: #{resblock1_forward.3} parent=11 // pred_check_branch
        %198 = sbr.rel (%p196) target = $region32
      $region31: #{resblock1_forward.3} parent=11 // pred_region
        _
      $region32: #{resblock1_forward.3} parent=11 // pred_fallthru
        _
    $region12: #{resblock1_forward.3} parent=5 // pred_fallthru
      _
    %p199 = scmp.lt.s32.totalorder %s12, 2
    // Predicated region
    $region33: #{resblock1_forward.3} parent=5 // pred_check
      %p200 = pneg %p199
    $region34: #{resblock1_forward.3} parent=5 // pred_check_branch
      %202 = sbr.rel (%p200) target = $region36
    $region35: #{resblock1_forward.3} parent=5 // pred_region
      // Predicated region
      $region37: #{resblock1_forward.3} parent=35 // pred_check
        %p203 = pneg %p32
      $region38: #{resblock1_forward.3} parent=35 // pred_check_branch
        %205 = sbr.rel (%p203) target = $region40
      $region39: #{resblock1_forward.3} parent=35 // pred_region
        %p206 = scmp.lt.s32.totalorder %s12, 1
        %s207 = scalar_select %p206, %s12, 1
        %s208 = smul.addr %s207, 2
        %s209 = smul.addr %s208, 4
        %s210 = scalar_lea.vmem %s0, %s209
      $region40: #{resblock1_forward.3} parent=35 // pred_fallthru
        _
    $region36: #{resblock1_forward.3} parent=5 // pred_fallthru
      _
    %p211 = scmp.le.s32.totalorder 1, %s12
    %p212 = scmp.lt.s32.totalorder %s12, 3
    %p213 = pnand %p211, %p212
    %p214 = pneg %p213
    // Predicated region
    $region41: #{resblock1_forward.3} parent=5 // pred_check
      _
    $region42: #{resblock1_forward.3} parent=5 // pred_check_branch
      %216 = sbr.rel (%p213) target = $region44
    $region43: #{resblock1_forward.3} parent=5 // pred_region
      %s217 = ssub.s32 %s12, 1
      %p218 = scmp.lt.s32.totalorder %s17, 1
      %s219 = scalar_select %p218, %s17, 1
      %s220 = smul.addr %s219, 2
      %s221 = smul.addr %s220, 4
      %s222 = scalar_lea.vmem %s0, %s221
      %p223 = pneg %p38
      %p224 = pneg %p35
      %p225 = pneg %p59
      %p226 = pneg %p56
      %p227 = pneg %p80
      %p228 = pneg %p77
      %p229 = pneg %p101
      %p230 = pneg %p98
      %p231 = pneg %p122
      %p232 = pneg %p119
      %p233 = pneg %p143
      %p234 = pneg %p140
      %p235 = pneg %p169
      %p236 = pneg %p166
      %p237 = scmp.lt.s32.totalorder %s17, 1
      %s238 = scalar_select %p237, %s17, 1
      %s239 = smul.addr %s238, 2
      %s240 = smul.addr %s239, 4
      %s241 = scalar_lea.vmem %s6, %s240
      %p242 = scmp.lt.s32.totalorder %s17, 1
      %s243 = scalar_select %p242, %s17, 1
      %s244 = smul.addr %s243, 2
      %s245 = smul.addr %s244, 4
      %s246 = scalar_lea.vmem %s0, %s245
      %p247 = scmp.lt.s32.totalorder %s17, 1
      %s248 = scalar_select %p247, %s17, 1
      %s249 = smul.addr %s248, 2
      %s250 = smul.addr %s249, 4
      %s251 = scalar_lea.vmem %s6, %s250
      %v252 = vld [vmem:[%s246] sm:$0xff]
      %v253 = vld [vmem:[%s1] sm:$0xf]
      %v254 = vld [vmem:[%s2] sm:$0xf]
      %v256 = vcombine.high %v252, %v252
      %257 = vrot.lane.b32.xlu0 %v256, 17
      %v258 = vpop.permute.xlu0 %257
      %260 = vrot.lane.b32.xlu0 %v252, 17
      %v261 = vpop.permute.xlu0 %260
      %vm262 = vcmask 138240
      %v263 = vsel %vm262, %v261, %v258
      %v266 = vsel %vm262, %v258, %v261
      %v267 = vld [vmem:[%s3] ss:$8 sm:$0x3]
      %v269 = vlaneseq
      %v270 = vshrl.u32 %v269, 7
      %v271 = vsub.s32 0, %v270
      %v272 = vrot.slane %v267, %v271
      %v273 = vlaneseq
      %v274 = vshrl.u32 %v273, 7
      %v275 = vsub.s32 1, %v274
      %v276 = vrot.slane %v267, %v275
      %v279 = vmul.f32 %v266, %v272
      %v280 = vmul.f32 %v263, %v276
      %281 = vrot.lane.b32.xlu0 %v256, 16
      %v282 = vpop.permute.xlu0 %281
      %284 = vrot.lane.b32.xlu0 %v252, 16
      %v285 = vpop.permute.xlu0 %284
      %vm286 = vcmask 130048
      %v287 = vsel %vm286, %v285, %v282
      %v290 = vsel %vm286, %v282, %v285
      %s291 = scalar_lea.vmem %s3, 1
      %v292 = vld [vmem:[%s291] ss:$8 sm:$0x3]
      %v294 = vlaneseq
      %v295 = vshrl.u32 %v294, 7
      %v296 = vsub.s32 0, %v295
      %v297 = vrot.slane %v292, %v296
      %v298 = vlaneseq
      %v299 = vshrl.u32 %v298, 7
      %v300 = vsub.s32 1, %v299
      %v301 = vrot.slane %v292, %v300
      %v304 = vmul.f32 %v290, %v297
      %v305 = vmul.f32 %v287, %v301
      %306 = vrot.lane.b32.xlu0 %v256, 15
      %v307 = vpop.permute.xlu0 %306
      %309 = vrot.lane.b32.xlu0 %v252, 15
      %v310 = vpop.permute.xlu0 %309
      %vm311 = vcmask 121856
      %v312 = vsel %vm311, %v310, %v307
      %v315 = vsel %vm311, %v307, %v310
      %s316 = scalar_lea.vmem %s3, 2
      %v317 = vld [vmem:[%s316] ss:$8 sm:$0x3]
      %v319 = vlaneseq
      %v320 = vshrl.u32 %v319, 7
      %v321 = vsub.s32 0, %v320
      %v322 = vrot.slane %v317, %v321
      %v323 = vlaneseq
      %v324 = vshrl.u32 %v323, 7
      %v325 = vsub.s32 1, %v324
      %v326 = vrot.slane %v317, %v325
      %v329 = vmul.f32 %v315, %v322
      %v330 = vmul.f32 %v312, %v326
      %331 = vrot.lane.b32.xlu0 %v256, 1
      %v332 = vpop.permute.xlu0 %331
      %334 = vrot.lane.b32.xlu0 %v252, 1
      %v335 = vpop.permute.xlu0 %334
      %vm336 = vcmask 7168
      %v337 = vsel %vm336, %v335, %v332
      %v340 = vsel %vm336, %v332, %v335
      %s341 = scalar_lea.vmem %s3, 3
      %v342 = vld [vmem:[%s341] ss:$8 sm:$0x3]
      %v344 = vlaneseq
      %v345 = vshrl.u32 %v344, 7
      %v346 = vsub.s32 0, %v345
      %v347 = vrot.slane %v342, %v346
      %v348 = vlaneseq
      %v349 = vshrl.u32 %v348, 7
      %v350 = vsub.s32 1, %v349
      %v351 = vrot.slane %v342, %v350
      %v354 = vmul.f32 %v340, %v347
      %v355 = vmul.f32 %v337, %v351
      %356 = vrot.lane.b32.xlu0 %v252, 127
      %v357 = vpop.permute.xlu0 %356
      %358 = vrot.lane.b32.xlu0 %v256, 127
      %v359 = vpop.permute.xlu0 %358
      %vm360 = vcmask 1039360
      %v361 = vsel %vm360, %v357, %v359
      %v365 = vsel %vm360, %v359, %v357
      %s366 = scalar_lea.vmem %s3, 5
      %v367 = vld [vmem:[%s366] ss:$8 sm:$0x3]
      %v369 = vlaneseq
      %v370 = vshrl.u32 %v369, 7
      %v371 = vsub.s32 0, %v370
      %v372 = vrot.slane %v367, %v371
      %v373 = vlaneseq
      %v374 = vshrl.u32 %v373, 7
      %v375 = vsub.s32 1, %v374
      %v376 = vrot.slane %v367, %v375
      %v379 = vmul.f32 %v361, %v372
      %v380 = vmul.f32 %v365, %v376
      %381 = vrot.lane.b32.xlu0 %v252, 113
      %v382 = vpop.permute.xlu0 %381
      %383 = vrot.lane.b32.xlu0 %v256, 113
      %v384 = vpop.permute.xlu0 %383
      %vm385 = vcmask 924672
      %v386 = vsel %vm385, %v382, %v384
      %v390 = vsel %vm385, %v384, %v382
      %s391 = scalar_lea.vmem %s3, 6
      %v392 = vld [vmem:[%s391] ss:$8 sm:$0x3]
      %v394 = vlaneseq
      %v395 = vshrl.u32 %v394, 7
      %v396 = vsub.s32 0, %v395
      %v397 = vrot.slane %v392, %v396
      %v398 = vlaneseq
      %v399 = vshrl.u32 %v398, 7
      %v400 = vsub.s32 1, %v399
      %v401 = vrot.slane %v392, %v400
      %v404 = vmul.f32 %v386, %v397
      %v405 = vmul.f32 %v390, %v401
      %406 = vrot.lane.b32.xlu0 %v252, 112
      %v407 = vpop.permute.xlu0 %406
      %408 = vrot.lane.b32.xlu0 %v256, 112
      %v409 = vpop.permute.xlu0 %408
      %vm410 = vcmask 916480
      %v411 = vsel %vm410, %v407, %v409
      %v415 = vsel %vm410, %v409, %v407
      %s416 = scalar_lea.vmem %s3, 7
      %v417 = vld [vmem:[%s416] ss:$8 sm:$0x3]
      %v419 = vlaneseq
      %v420 = vshrl.u32 %v419, 7
      %v421 = vsub.s32 0, %v420
      %v422 = vrot.slane %v417, %v421
      %v423 = vlaneseq
      %v424 = vshrl.u32 %v423, 7
      %v425 = vsub.s32 1, %v424
      %v426 = vrot.slane %v417, %v425
      %v429 = vmul.f32 %v411, %v422
      %v430 = vmul.f32 %v415, %v426
      %431 = vrot.lane.b32.xlu0 %v252, 111
      %v432 = vpop.permute.xlu0 %431
      %433 = vrot.lane.b32.xlu0 %v256, 111
      %v434 = vpop.permute.xlu0 %433
      %vm435 = vcmask 908288
      %v436 = vsel %vm435, %v432, %v434
      %v440 = vsel %vm435, %v434, %v432
      %s441 = scalar_lea.vmem %s3, 16
      %v442 = vld [vmem:[%s441] ss:$8 sm:$0x3]
      %v444 = vlaneseq
      %v445 = vshrl.u32 %v444, 7
      %v446 = vsub.s32 0, %v445
      %v447 = vrot.slane %v442, %v446
      %v448 = vlaneseq
      %v449 = vshrl.u32 %v448, 7
      %v450 = vsub.s32 1, %v449
      %v451 = vrot.slane %v442, %v450
      %v454 = vmul.f32 %v436, %v447
      %v455 = vmul.f32 %v440, %v451
      %v458 = vrot.slane %v304, 4
      %v459 = vrot.slane %v305, 4
      %v464 = vrot.slane %v354, 4
      %v465 = vrot.slane %v355, 4
      %v471 = vrot.slane %v379, 4
      %v472 = vrot.slane %v380, 4
      %v477 = vrot.slane %v429, 4
      %v478 = vrot.slane %v430, 4
      %vm481 = vcmask 1043456
      %v482 = vsel %vm481, %v279, %v458
      %v483 = vsel %vm481, %v280, %v459
      %v484 = vsel %vm481, %v329, %v464
      %v485 = vsel %vm481, %v330, %v465
      %v486 = vsel %vm481, %v252, %v471
      %v487 = vsel %vm481, %v256, %v472
      %v488 = vsel %vm481, %v404, %v477
      %v489 = vsel %vm481, %v405, %v478
      %vm490 = vcmask 293888
      %v492 = vsel %vm490, %v253, 0
      %v495 = vsel %vm481, %v454, 0
      %v498 = vsel %vm481, %v455, 0
      %500 = vmatprep.subr.mxu0 %v483
      %501 = vmatpush1.msra.mxu0 %v482
      %502 = vmatprep.subr.mxu0 %v485
      %503 = vmatpush1.msra.mxu0 %v484
      %504 = vmatprep.subr.mxu0 %v487
      %505 = vmatpush1.msra.mxu0 %v486
      %506 = vmatprep.subr.mxu0 %v489
      %507 = vmatpush1.msra.mxu0 %v488
      %508 = vmatprep.subr.mxu0 %v498
      %509 = vmatpush1.msra.mxu0 %v495
      %510 = vmatprep.subr.mxu0 0.0
      %511 = vmatpush1.msra.mxu0 0.0
      %512 = vmatprep.subr.mxu0 0.0
      %513 = vmatpush1.msra.mxu0 0.0
      %514 = vmatprep.subr.mxu0 0.0
      %515 = vmatpush1.msra.mxu0 0.0
      %516 = vmatprep.subr.mxu0 0.0
      %517 = vmatpush1.msra.mxu0 0.0
      %518 = vmatprep.subr.mxu0 0.0
      %519 = vmatpush1.msra.mxu0 0.0
      %520 = vmatprep.subr.mxu0 0.0
      %521 = vmatpush1.msra.mxu0 0.0
      %522 = vmatprep.subr.mxu0 0.0
      %523 = vmatpush1.msra.mxu0 0.0
      %524 = vmatprep.subr.mxu0 0.0
      %525 = vmatpush1.msra.mxu0 0.0
      %526 = vmatprep.subr.mxu0 0.0
      %527 = vmatpush1.msra.mxu0 0.0
      %528 = vmatprep.subr.mxu0 0.0
      %529 = vmatpush1.msra.mxu0 0.0
      %530 = vmatprep.subr.mxu0 0.0
      %531 = vmatpush1.msra.mxu0 0.0
      %532 = vmatprep.subr.mxu0 0.0
      %533 = vmatpush1.msra.mxu0 0.0
      %534 = vmatprep.subr.mxu0 0.0
      %535 = vmatpush1.msra.mxu0 0.0
      %536 = vmatprep.subr.mxu0 0.0
      %537 = vmatpush1.msra.mxu0 0.0
      %538 = vmatprep.subr.mxu0 0.0
      %539 = vmatpush1.msra.mxu0 0.0
      %540 = vmatprep.subr.mxu0 0.0
      %541 = vmatpush1.msra.mxu0 0.0
      %542 = vmatprep.subr.mxu0 0.0
      %543 = vmatpush1.msra.mxu0 0.0
      %544 = vmatprep.subr.mxu0 0.0
      %545 = vmatpush1.msra.mxu0 0.0
      %546 = vmatprep.subr.mxu0 0.0
      %547 = vmatpush1.msra.mxu0 0.0
      %548 = vmatprep.subr.mxu0 0.0
      %549 = vmatpush1.msra.mxu0 0.0
      %550 = vmatprep.subr.mxu0 0.0
      %551 = vmatpush1.msra.mxu0 0.0
      %552 = vmatprep.subr.mxu0 0.0
      %553 = vmatpush1.msra.mxu0 0.0
      %554 = vmatprep.subr.mxu0 0.0
      %555 = vmatpush1.msra.mxu0 0.0
      %556 = vmatprep.subr.mxu0 0.0
      %557 = vmatpush1.msra.mxu0 0.0
      %558 = vmatprep.subr.mxu0 0.0
      %559 = vmatpush1.msra.mxu0 0.0
      %560 = vmatprep.subr.mxu0 0.0
      %561 = vmatpush1.msra.mxu0 0.0
      %562 = vmatprep.subr.mxu0 0.0
      %563 = vmatpush1.msra.mxu0 0.0
      %564 = vmatprep.mubr.f32.mxu0 0.0
      %565 = vmatmul.mubr.f32.gmra.mrb[0].mxu0 %v492
      %v566 = vpop.f32.mrb[0].mxu0
      %v567 = vadd.f32 0.0, %v566
      %v568 = vpop.f32.mrb[0].mxu0
      %v569 = vadd.f32 0.0, %v568
      %570 = vdwg.mxu0
      %v571 = vld [vmem:[%s4] sm:$0xf]
      %573 = vset.pattern.permute.xlu0 0
      %574 = vperm.xlu0 %573, %v571
      %v575 = vpop.permute.xlu0 %574
      %v577 = vmul.f32 %v567, %v575
      %v578 = vmul.f32 %v569, %v575
      %v579 = vld [vmem:[%s5] sm:$0xf]
      %581 = vset.pattern.permute.xlu0 0
      %582 = vperm.xlu0 %581, %v579
      %v583 = vpop.permute.xlu0 %582
      %v585 = vadd.f32 %v577, %v583
      %v586 = vadd.f32 %v578, %v583
      %vm587 = vcmp.ge.f32.partialorder %v585, 0.0
      %vm588 = vcmp.ge.f32.partialorder %v586, 0.0
      %v589 = vmul.f32 %v585, 0.01
      %v590 = vmul.f32 %v586, 0.01
      %v591 = vsel %vm587, %v585, %v589
      %v592 = vsel %vm588, %v586, %v590
      %594 = vrot.lane.b32.xlu0 %v592, 17
      %v595 = vpop.permute.xlu0 %594
      %598 = vrot.lane.b32.xlu0 %v591, 17
      %v599 = vpop.permute.xlu0 %598
      %v600 = vsel %vm262, %v599, %v595
      %v603 = vsel %vm262, %v595, %v599
      %v604 = vmul.f32 %v603, %v272
      %v605 = vmul.f32 %v600, %v276
      %606 = vrot.lane.b32.xlu0 %v592, 16
      %v607 = vpop.permute.xlu0 %606
      %609 = vrot.lane.b32.xlu0 %v591, 16
      %v610 = vpop.permute.xlu0 %609
      %v611 = vsel %vm286, %v610, %v607
      %v614 = vsel %vm286, %v607, %v610
      %v615 = vmul.f32 %v614, %v297
      %v616 = vmul.f32 %v611, %v301
      %617 = vrot.lane.b32.xlu0 %v592, 15
      %v618 = vpop.permute.xlu0 %617
      %620 = vrot.lane.b32.xlu0 %v591, 15
      %v621 = vpop.permute.xlu0 %620
      %v622 = vsel %vm311, %v621, %v618
      %v625 = vsel %vm311, %v618, %v621
      %v626 = vmul.f32 %v625, %v322
      %v627 = vmul.f32 %v622, %v326
      %628 = vrot.lane.b32.xlu0 %v592, 1
      %v629 = vpop.permute.xlu0 %628
      %631 = vrot.lane.b32.xlu0 %v591, 1
      %v632 = vpop.permute.xlu0 %631
      %v633 = vsel %vm336, %v632, %v629
      %v636 = vsel %vm336, %v629, %v632
      %v637 = vmul.f32 %v636, %v347
      %v638 = vmul.f32 %v633, %v351
      %639 = vrot.lane.b32.xlu0 %v591, 127
      %v640 = vpop.permute.xlu0 %639
      %641 = vrot.lane.b32.xlu0 %v592, 127
      %v642 = vpop.permute.xlu0 %641
      %v643 = vsel %vm360, %v640, %v642
      %v647 = vsel %vm360, %v642, %v640
      %v648 = vmul.f32 %v643, %v372
      %v649 = vmul.f32 %v647, %v376
      %650 = vrot.lane.b32.xlu0 %v591, 113
      %v651 = vpop.permute.xlu0 %650
      %652 = vrot.lane.b32.xlu0 %v592, 113
      %v653 = vpop.permute.xlu0 %652
      %v654 = vsel %vm385, %v651, %v653
      %v658 = vsel %vm385, %v653, %v651
      %v659 = vmul.f32 %v654, %v397
      %v660 = vmul.f32 %v658, %v401
      %661 = vrot.lane.b32.xlu0 %v591, 112
      %v662 = vpop.permute.xlu0 %661
      %663 = vrot.lane.b32.xlu0 %v592, 112
      %v664 = vpop.permute.xlu0 %663
      %v665 = vsel %vm410, %v662, %v664
      %v669 = vsel %vm410, %v664, %v662
      %v670 = vmul.f32 %v665, %v422
      %v671 = vmul.f32 %v669, %v426
      %672 = vrot.lane.b32.xlu0 %v591, 111
      %v673 = vpop.permute.xlu0 %672
      %674 = vrot.lane.b32.xlu0 %v592, 111
      %v675 = vpop.permute.xlu0 %674
      %v676 = vsel %vm435, %v673, %v675
      %v680 = vsel %vm435, %v675, %v673
      %v681 = vmul.f32 %v676, %v447
      %v682 = vmul.f32 %v680, %v451
      %v685 = vrot.slane %v615, 4
      %v686 = vrot.slane %v616, 4
      %v691 = vrot.slane %v637, 4
      %v692 = vrot.slane %v638, 4
      %v697 = vrot.slane %v648, 4
      %v698 = vrot.slane %v649, 4
      %v703 = vrot.slane %v670, 4
      %v704 = vrot.slane %v671, 4
      %v707 = vsel %vm481, %v604, %v685
      %v708 = vsel %vm481, %v605, %v686
      %v709 = vsel %vm481, %v626, %v691
      %v710 = vsel %vm481, %v627, %v692
      %v711 = vsel %vm481, %v591, %v697
      %v712 = vsel %vm481, %v592, %v698
      %v713 = vsel %vm481, %v659, %v703
      %v714 = vsel %vm481, %v660, %v704
      %v716 = vsel %vm481, %v681, 0
      %v719 = vsel %vm481, %v682, 0
      %721 = vmatprep.subr.mxu0 %v708
      %722 = vmatpush1.msra.mxu0 %v707
      %723 = vmatprep.subr.mxu0 %v710
      %724 = vmatpush1.msra.mxu0 %v709
      %725 = vmatprep.subr.mxu0 %v712
      %726 = vmatpush1.msra.mxu0 %v711
      %727 = vmatprep.subr.mxu0 %v714
      %728 = vmatpush1.msra.mxu0 %v713
      %729 = vmatprep.subr.mxu0 %v719
      %730 = vmatpush1.msra.mxu0 %v716
      %731 = vmatprep.subr.mxu0 0.0
      %732 = vmatpush1.msra.mxu0 0.0
      %733 = vmatprep.subr.mxu0 0.0
      %734 = vmatpush1.msra.mxu0 0.0
      %735 = vmatprep.subr.mxu0 0.0
      %736 = vmatpush1.msra.mxu0 0.0
      %737 = vmatprep.subr.mxu0 0.0
      %738 = vmatpush1.msra.mxu0 0.0
      %739 = vmatprep.subr.mxu0 0.0
      %740 = vmatpush1.msra.mxu0 0.0
      %741 = vmatprep.subr.mxu0 0.0
      %742 = vmatpush1.msra.mxu0 0.0
      %743 = vmatprep.subr.mxu0 0.0
      %744 = vmatpush1.msra.mxu0 0.0
      %745 = vmatprep.subr.mxu0 0.0
      %746 = vmatpush1.msra.mxu0 0.0
      %747 = vmatprep.subr.mxu0 0.0
      %748 = vmatpush1.msra.mxu0 0.0
      %749 = vmatprep.subr.mxu0 0.0
      %750 = vmatpush1.msra.mxu0 0.0
      %751 = vmatprep.subr.mxu0 0.0
      %752 = vmatpush1.msra.mxu0 0.0
      %753 = vmatprep.subr.mxu0 0.0
      %754 = vmatpush1.msra.mxu0 0.0
      %755 = vmatprep.subr.mxu0 0.0
      %756 = vmatpush1.msra.mxu0 0.0
      %757 = vmatprep.subr.mxu0 0.0
      %758 = vmatpush1.msra.mxu0 0.0
      %759 = vmatprep.subr.mxu0 0.0
      %760 = vmatpush1.msra.mxu0 0.0
      %761 = vmatprep.subr.mxu0 0.0
      %762 = vmatpush1.msra.mxu0 0.0
      %763 = vmatprep.subr.mxu0 0.0
      %764 = vmatpush1.msra.mxu0 0.0
      %765 = vmatprep.subr.mxu0 0.0
      %766 = vmatpush1.msra.mxu0 0.0
      %767 = vmatprep.subr.mxu0 0.0
      %768 = vmatpush1.msra.mxu0 0.0
      %769 = vmatprep.subr.mxu0 0.0
      %770 = vmatpush1.msra.mxu0 0.0
      %771 = vmatprep.subr.mxu0 0.0
      %772 = vmatpush1.msra.mxu0 0.0
      %773 = vmatprep.subr.mxu0 0.0
      %774 = vmatpush1.msra.mxu0 0.0
      %775 = vmatprep.subr.mxu0 0.0
      %776 = vmatpush1.msra.mxu0 0.0
      %777 = vmatprep.subr.mxu0 0.0
      %778 = vmatpush1.msra.mxu0 0.0
      %779 = vmatprep.subr.mxu0 0.0
      %780 = vmatpush1.msra.mxu0 0.0
      %781 = vmatprep.subr.mxu0 0.0
      %782 = vmatpush1.msra.mxu0 0.0
      %783 = vmatprep.subr.mxu0 0.0
      %784 = vmatpush1.msra.mxu0 0.0
      %785 = vmatprep.mubr.f32.mxu0 0.0
      %786 = vmatmul.mubr.f32.gmra.mrb[0].mxu0 %v492
      %v787 = vpop.f32.mrb[0].mxu0
      %v788 = vadd.f32 0.0, %v787
      %v789 = vpop.f32.mrb[0].mxu0
      %v790 = vadd.f32 0.0, %v789
      %791 = vdwg.mxu0
      %793 = vrot.lane.b32.xlu0 %v790, 34
      %v794 = vpop.permute.xlu0 %793
      %797 = vrot.lane.b32.xlu0 %v788, 34
      %v798 = vpop.permute.xlu0 %797
      %vm799 = vcmask 277504
      %v800 = vsel %vm799, %v798, %v794
      %v803 = vsel %vm799, %v794, %v798
      %s804 = scalar_lea.vmem %s3, 32
      %v805 = vld [vmem:[%s804] ss:$8 sm:$0x3]
      %v807 = vlaneseq
      %v808 = vshrl.u32 %v807, 7
      %v809 = vsub.s32 0, %v808
      %v810 = vrot.slane %v805, %v809
      %v811 = vlaneseq
      %v812 = vshrl.u32 %v811, 7
      %v813 = vsub.s32 1, %v812
      %v814 = vrot.slane %v805, %v813
      %v817 = vmul.f32 %v803, %v810
      %v818 = vmul.f32 %v800, %v814
      %819 = vrot.lane.b32.xlu0 %v790, 32
      %v820 = vpop.permute.xlu0 %819
      %822 = vrot.lane.b32.xlu0 %v788, 32
      %v823 = vpop.permute.xlu0 %822
      %vm824 = vcmask 261120
      %v825 = vsel %vm824, %v823, %v820
      %v828 = vsel %vm824, %v820, %v823
      %s829 = scalar_lea.vmem %s804, 1
      %v830 = vld [vmem:[%s829] ss:$8 sm:$0x3]
      %v832 = vlaneseq
      %v833 = vshrl.u32 %v832, 7
      %v834 = vsub.s32 0, %v833
      %v835 = vrot.slane %v830, %v834
      %v836 = vlaneseq
      %v837 = vshrl.u32 %v836, 7
      %v838 = vsub.s32 1, %v837
      %v839 = vrot.slane %v830, %v838
      %v842 = vmul.f32 %v828, %v835
      %v843 = vmul.f32 %v825, %v839
      %844 = vrot.lane.b32.xlu0 %v790, 30
      %v845 = vpop.permute.xlu0 %844
      %847 = vrot.lane.b32.xlu0 %v788, 30
      %v848 = vpop.permute.xlu0 %847
      %vm849 = vcmask 244736
      %v850 = vsel %vm849, %v848, %v845
      %v853 = vsel %vm849, %v845, %v848
      %s854 = scalar_lea.vmem %s804, 2
      %v855 = vld [vmem:[%s854] ss:$8 sm:$0x3]
      %v857 = vlaneseq
      %v858 = vshrl.u32 %v857, 7
      %v859 = vsub.s32 0, %v858
      %v860 = vrot.slane %v855, %v859
      %v861 = vlaneseq
      %v862 = vshrl.u32 %v861, 7
      %v863 = vsub.s32 1, %v862
      %v864 = vrot.slane %v855, %v863
      %v867 = vmul.f32 %v853, %v860
      %v868 = vmul.f32 %v850, %v864
      %869 = vrot.lane.b32.xlu0 %v790, 2
      %v870 = vpop.permute.xlu0 %869
      %872 = vrot.lane.b32.xlu0 %v788, 2
      %v873 = vpop.permute.xlu0 %872
      %vm874 = vcmask 15360
      %v875 = vsel %vm874, %v873, %v870
      %v878 = vsel %vm874, %v870, %v873
      %s879 = scalar_lea.vmem %s804, 3
      %v880 = vld [vmem:[%s879] ss:$8 sm:$0x3]
      %v882 = vlaneseq
      %v883 = vshrl.u32 %v882, 7
      %v884 = vsub.s32 0, %v883
      %v885 = vrot.slane %v880, %v884
      %v886 = vlaneseq
      %v887 = vshrl.u32 %v886, 7
      %v888 = vsub.s32 1, %v887
      %v889 = vrot.slane %v880, %v888
      %v892 = vmul.f32 %v878, %v885
      %v893 = vmul.f32 %v875, %v889
      %894 = vrot.lane.b32.xlu0 %v788, 126
      %v895 = vpop.permute.xlu0 %894
      %896 = vrot.lane.b32.xlu0 %v790, 126
      %v897 = vpop.permute.xlu0 %896
      %vm898 = vcmask 1031168
      %v899 = vsel %vm898, %v895, %v897
      %v903 = vsel %vm898, %v897, %v895
      %s904 = scalar_lea.vmem %s804, 5
      %v905 = vld [vmem:[%s904] ss:$8 sm:$0x3]
      %v907 = vlaneseq
      %v908 = vshrl.u32 %v907, 7
      %v909 = vsub.s32 0, %v908
      %v910 = vrot.slane %v905, %v909
      %v911 = vlaneseq
      %v912 = vshrl.u32 %v911, 7
      %v913 = vsub.s32 1, %v912
      %v914 = vrot.slane %v905, %v913
      %v917 = vmul.f32 %v899, %v910
      %v918 = vmul.f32 %v903, %v914
      %919 = vrot.lane.b32.xlu0 %v788, 98
      %v920 = vpop.permute.xlu0 %919
      %921 = vrot.lane.b32.xlu0 %v790, 98
      %v922 = vpop.permute.xlu0 %921
      %vm923 = vcmask 801792
      %v924 = vsel %vm923, %v920, %v922
      %v928 = vsel %vm923, %v922, %v920
      %s929 = scalar_lea.vmem %s804, 6
      %v930 = vld [vmem:[%s929] ss:$8 sm:$0x3]
      %v932 = vlaneseq
      %v933 = vshrl.u32 %v932, 7
      %v934 = vsub.s32 0, %v933
      %v935 = vrot.slane %v930, %v934
      %v936 = vlaneseq
      %v937 = vshrl.u32 %v936, 7
      %v938 = vsub.s32 1, %v937
      %v939 = vrot.slane %v930, %v938
      %v942 = vmul.f32 %v924, %v935
      %v943 = vmul.f32 %v928, %v939
      %944 = vrot.lane.b32.xlu0 %v788, 96
      %v945 = vpop.permute.xlu0 %944
      %946 = vrot.lane.b32.xlu0 %v790, 96
      %v947 = vpop.permute.xlu0 %946
      %vm948 = vcmask 785408
      %v949 = vsel %vm948, %v945, %v947
      %v953 = vsel %vm948, %v947, %v945
      %s954 = scalar_lea.vmem %s804, 7
      %v955 = vld [vmem:[%s954] ss:$8 sm:$0x3]
      %v957 = vlaneseq
      %v958 = vshrl.u32 %v957, 7
      %v959 = vsub.s32 0, %v958
      %v960 = vrot.slane %v955, %v959
      %v961 = vlaneseq
      %v962 = vshrl.u32 %v961, 7
      %v963 = vsub.s32 1, %v962
      %v964 = vrot.slane %v955, %v963
      %v967 = vmul.f32 %v949, %v960
      %v968 = vmul.f32 %v953, %v964
      %969 = vrot.lane.b32.xlu0 %v788, 94
      %v970 = vpop.permute.xlu0 %969
      %971 = vrot.lane.b32.xlu0 %v790, 94
      %v972 = vpop.permute.xlu0 %971
      %vm973 = vcmask 769024
      %v974 = vsel %vm973, %v970, %v972
      %v978 = vsel %vm973, %v972, %v970
      %s979 = scalar_lea.vmem %s804, 16
      %v980 = vld [vmem:[%s979] ss:$8 sm:$0x3]
      %v982 = vlaneseq
      %v983 = vshrl.u32 %v982, 7
      %v984 = vsub.s32 0, %v983
      %v985 = vrot.slane %v980, %v984
      %v986 = vlaneseq
      %v987 = vshrl.u32 %v986, 7
      %v988 = vsub.s32 1, %v987
      %v989 = vrot.slane %v980, %v988
      %v992 = vmul.f32 %v974, %v985
      %v993 = vmul.f32 %v978, %v989
      %v996 = vrot.slane %v842, 4
      %v997 = vrot.slane %v843, 4
      %v1002 = vrot.slane %v892, 4
      %v1003 = vrot.slane %v893, 4
      %v1008 = vrot.slane %v917, 4
      %v1009 = vrot.slane %v918, 4
      %v1014 = vrot.slane %v967, 4
      %v1015 = vrot.slane %v968, 4
      %v1018 = vsel %vm481, %v817, %v996
      %v1019 = vsel %vm481, %v818, %v997
      %v1020 = vsel %vm481, %v867, %v1002
      %v1021 = vsel %vm481, %v868, %v1003
      %v1022 = vsel %vm481, %v788, %v1008
      %v1023 = vsel %vm481, %v790, %v1009
      %v1024 = vsel %vm481, %v942, %v1014
      %v1025 = vsel %vm481, %v943, %v1015
      %v1027 = vsel %vm490, %v254, 0
      %v1030 = vsel %vm481, %v992, 0
      %v1033 = vsel %vm481, %v993, 0
      %1035 = vmatprep.subr.mxu0 %v1019
      %1036 = vmatpush1.msra.mxu0 %v1018
      %1037 = vmatprep.subr.mxu0 %v1021
      %1038 = vmatpush1.msra.mxu0 %v1020
      %1039 = vmatprep.subr.mxu0 %v1023
      %1040 = vmatpush1.msra.mxu0 %v1022
      %1041 = vmatprep.subr.mxu0 %v1025
      %1042 = vmatpush1.msra.mxu0 %v1024
      %1043 = vmatprep.subr.mxu0 %v1033
      %1044 = vmatpush1.msra.mxu0 %v1030
      %1045 = vmatprep.subr.mxu0 0.0
      %1046 = vmatpush1.msra.mxu0 0.0
      %1047 = vmatprep.subr.mxu0 0.0
      %1048 = vmatpush1.msra.mxu0 0.0
      %1049 = vmatprep.subr.mxu0 0.0
      %1050 = vmatpush1.msra.mxu0 0.0
      %1051 = vmatprep.subr.mxu0 0.0
      %1052 = vmatpush1.msra.mxu0 0.0
      %1053 = vmatprep.subr.mxu0 0.0
      %1054 = vmatpush1.msra.mxu0 0.0
      %1055 = vmatprep.subr.mxu0 0.0
      %1056 = vmatpush1.msra.mxu0 0.0
      %1057 = vmatprep.subr.mxu0 0.0
      %1058 = vmatpush1.msra.mxu0 0.0
      %1059 = vmatprep.subr.mxu0 0.0
      %1060 = vmatpush1.msra.mxu0 0.0
      %1061 = vmatprep.subr.mxu0 0.0
      %1062 = vmatpush1.msra.mxu0 0.0
      %1063 = vmatprep.subr.mxu0 0.0
      %1064 = vmatpush1.msra.mxu0 0.0
      %1065 = vmatprep.subr.mxu0 0.0
      %1066 = vmatpush1.msra.mxu0 0.0
      %1067 = vmatprep.subr.mxu0 0.0
      %1068 = vmatpush1.msra.mxu0 0.0
      %1069 = vmatprep.subr.mxu0 0.0
      %1070 = vmatpush1.msra.mxu0 0.0
      %1071 = vmatprep.subr.mxu0 0.0
      %1072 = vmatpush1.msra.mxu0 0.0
      %1073 = vmatprep.subr.mxu0 0.0
      %1074 = vmatpush1.msra.mxu0 0.0
      %1075 = vmatprep.subr.mxu0 0.0
      %1076 = vmatpush1.msra.mxu0 0.0
      %1077 = vmatprep.subr.mxu0 0.0
      %1078 = vmatpush1.msra.mxu0 0.0
      %1079 = vmatprep.subr.mxu0 0.0
      %1080 = vmatpush1.msra.mxu0 0.0
      %1081 = vmatprep.subr.mxu0 0.0
      %1082 = vmatpush1.msra.mxu0 0.0
      %1083 = vmatprep.subr.mxu0 0.0
      %1084 = vmatpush1.msra.mxu0 0.0
      %1085 = vmatprep.subr.mxu0 0.0
      %1086 = vmatpush1.msra.mxu0 0.0
      %1087 = vmatprep.subr.mxu0 0.0
      %1088 = vmatpush1.msra.mxu0 0.0
      %1089 = vmatprep.subr.mxu0 0.0
      %1090 = vmatpush1.msra.mxu0 0.0
      %1091 = vmatprep.subr.mxu0 0.0
      %1092 = vmatpush1.msra.mxu0 0.0
      %1093 = vmatprep.subr.mxu0 0.0
      %1094 = vmatpush1.msra.mxu0 0.0
      %1095 = vmatprep.subr.mxu0 0.0
      %1096 = vmatpush1.msra.mxu0 0.0
      %1097 = vmatprep.subr.mxu0 0.0
      %1098 = vmatpush1.msra.mxu0 0.0
      %1099 = vmatprep.mubr.f32.mxu0 0.0
      %1100 = vmatmul.mubr.f32.gmra.mrb[0].mxu0 %v1027
      %v1101 = vpop.f32.mrb[0].mxu0
      %v1102 = vadd.f32 0.0, %v1101
      %v1103 = vpop.f32.mrb[0].mxu0
      %v1104 = vadd.f32 0.0, %v1103
      %1105 = vdwg.mxu0
      %1107 = vrot.lane.b32.xlu0 %v1104, 17
      %v1108 = vpop.permute.xlu0 %1107
      %1111 = vrot.lane.b32.xlu0 %v1102, 17
      %v1112 = vpop.permute.xlu0 %1111
      %v1113 = vsel %vm262, %v1112, %v1108
      %v1116 = vsel %vm262, %v1108, %v1112
      %v1117 = vmul.f32 %v1116, %v272
      %v1118 = vmul.f32 %v1113, %v276
      %1119 = vrot.lane.b32.xlu0 %v1104, 16
      %v1120 = vpop.permute.xlu0 %1119
      %1122 = vrot.lane.b32.xlu0 %v1102, 16
      %v1123 = vpop.permute.xlu0 %1122
      %v1124 = vsel %vm286, %v1123, %v1120
      %v1127 = vsel %vm286, %v1120, %v1123
      %v1128 = vmul.f32 %v1127, %v297
      %v1129 = vmul.f32 %v1124, %v301
      %1130 = vrot.lane.b32.xlu0 %v1104, 15
      %v1131 = vpop.permute.xlu0 %1130
      %1133 = vrot.lane.b32.xlu0 %v1102, 15
      %v1134 = vpop.permute.xlu0 %1133
      %v1135 = vsel %vm311, %v1134, %v1131
      %v1138 = vsel %vm311, %v1131, %v1134
      %v1139 = vmul.f32 %v1138, %v322
      %v1140 = vmul.f32 %v1135, %v326
      %1141 = vrot.lane.b32.xlu0 %v1104, 1
      %v1142 = vpop.permute.xlu0 %1141
      %1144 = vrot.lane.b32.xlu0 %v1102, 1
      %v1145 = vpop.permute.xlu0 %1144
      %v1146 = vsel %vm336, %v1145, %v1142
      %v1149 = vsel %vm336, %v1142, %v1145
      %v1150 = vmul.f32 %v1149, %v347
      %v1151 = vmul.f32 %v1146, %v351
      %1152 = vrot.lane.b32.xlu0 %v1102, 127
      %v1153 = vpop.permute.xlu0 %1152
      %1154 = vrot.lane.b32.xlu0 %v1104, 127
      %v1155 = vpop.permute.xlu0 %1154
      %v1156 = vsel %vm360, %v1153, %v1155
      %v1160 = vsel %vm360, %v1155, %v1153
      %v1161 = vmul.f32 %v1156, %v372
      %v1162 = vmul.f32 %v1160, %v376
      %1163 = vrot.lane.b32.xlu0 %v1102, 113
      %v1164 = vpop.permute.xlu0 %1163
      %1165 = vrot.lane.b32.xlu0 %v1104, 113
      %v1166 = vpop.permute.xlu0 %1165
      %v1167 = vsel %vm385, %v1164, %v1166
      %v1171 = vsel %vm385, %v1166, %v1164
      %v1172 = vmul.f32 %v1167, %v397
      %v1173 = vmul.f32 %v1171, %v401
      %1174 = vrot.lane.b32.xlu0 %v1102, 112
      %v1175 = vpop.permute.xlu0 %1174
      %1176 = vrot.lane.b32.xlu0 %v1104, 112
      %v1177 = vpop.permute.xlu0 %1176
      %v1178 = vsel %vm410, %v1175, %v1177
      %v1182 = vsel %vm410, %v1177, %v1175
      %v1183 = vmul.f32 %v1178, %v422
      %v1184 = vmul.f32 %v1182, %v426
      %1185 = vrot.lane.b32.xlu0 %v1102, 111
      %v1186 = vpop.permute.xlu0 %1185
      %1187 = vrot.lane.b32.xlu0 %v1104, 111
      %v1188 = vpop.permute.xlu0 %1187
      %v1189 = vsel %vm435, %v1186, %v1188
      %v1193 = vsel %vm435, %v1188, %v1186
      %v1194 = vmul.f32 %v1189, %v447
      %v1195 = vmul.f32 %v1193, %v451
      %v1198 = vrot.slane %v1128, 4
      %v1199 = vrot.slane %v1129, 4
      %v1204 = vrot.slane %v1150, 4
      %v1205 = vrot.slane %v1151, 4
      %v1210 = vrot.slane %v1161, 4
      %v1211 = vrot.slane %v1162, 4
      %v1216 = vrot.slane %v1183, 4
      %v1217 = vrot.slane %v1184, 4
      %v1220 = vsel %vm481, %v1117, %v1198
      %v1221 = vsel %vm481, %v1118, %v1199
      %v1222 = vsel %vm481, %v1139, %v1204
      %v1223 = vsel %vm481, %v1140, %v1205
      %v1224 = vsel %vm481, %v1102, %v1210
      %v1225 = vsel %vm481, %v1104, %v1211
      %v1226 = vsel %vm481, %v1172, %v1216
      %v1227 = vsel %vm481, %v1173, %v1217
      %v1229 = vsel %vm481, %v1194, 0
      %v1232 = vsel %vm481, %v1195, 0
      %1234 = vmatprep.subr.mxu0 %v1221
      %1235 = vmatpush1.msra.mxu0 %v1220
      %1236 = vmatprep.subr.mxu0 %v1223
      %1237 = vmatpush1.msra.mxu0 %v1222
      %1238 = vmatprep.subr.mxu0 %v1225
      %1239 = vmatpush1.msra.mxu0 %v1224
      %1240 = vmatprep.subr.mxu0 %v1227
      %1241 = vmatpush1.msra.mxu0 %v1226
      %1242 = vmatprep.subr.mxu0 %v1232
      %1243 = vmatpush1.msra.mxu0 %v1229
      %1244 = vmatprep.subr.mxu0 0.0
      %1245 = vmatpush1.msra.mxu0 0.0
      %1246 = vmatprep.subr.mxu0 0.0
      %1247 = vmatpush1.msra.mxu0 0.0
      %1248 = vmatprep.subr.mxu0 0.0
      %1249 = vmatpush1.msra.mxu0 0.0
      %1250 = vmatprep.subr.mxu0 0.0
      %1251 = vmatpush1.msra.mxu0 0.0
      %1252 = vmatprep.subr.mxu0 0.0
      %1253 = vmatpush1.msra.mxu0 0.0
      %1254 = vmatprep.subr.mxu0 0.0
      %1255 = vmatpush1.msra.mxu0 0.0
      %1256 = vmatprep.subr.mxu0 0.0
      %1257 = vmatpush1.msra.mxu0 0.0
      %1258 = vmatprep.subr.mxu0 0.0
      %1259 = vmatpush1.msra.mxu0 0.0
      %1260 = vmatprep.subr.mxu0 0.0
      %1261 = vmatpush1.msra.mxu0 0.0
      %1262 = vmatprep.subr.mxu0 0.0
      %1263 = vmatpush1.msra.mxu0 0.0
      %1264 = vmatprep.subr.mxu0 0.0
      %1265 = vmatpush1.msra.mxu0 0.0
      %1266 = vmatprep.subr.mxu0 0.0
      %1267 = vmatpush1.msra.mxu0 0.0
      %1268 = vmatprep.subr.mxu0 0.0
      %1269 = vmatpush1.msra.mxu0 0.0
      %1270 = vmatprep.subr.mxu0 0.0
      %1271 = vmatpush1.msra.mxu0 0.0
      %1272 = vmatprep.subr.mxu0 0.0
      %1273 = vmatpush1.msra.mxu0 0.0
      %1274 = vmatprep.subr.mxu0 0.0
      %1275 = vmatpush1.msra.mxu0 0.0
      %1276 = vmatprep.subr.mxu0 0.0
      %1277 = vmatpush1.msra.mxu0 0.0
      %1278 = vmatprep.subr.mxu0 0.0
      %1279 = vmatpush1.msra.mxu0 0.0
      %1280 = vmatprep.subr.mxu0 0.0
      %1281 = vmatpush1.msra.mxu0 0.0
      %1282 = vmatprep.subr.mxu0 0.0
      %1283 = vmatpush1.msra.mxu0 0.0
      %1284 = vmatprep.subr.mxu0 0.0
      %1285 = vmatpush1.msra.mxu0 0.0
      %1286 = vmatprep.subr.mxu0 0.0
      %1287 = vmatpush1.msra.mxu0 0.0
      %1288 = vmatprep.subr.mxu0 0.0
      %1289 = vmatpush1.msra.mxu0 0.0
      %1290 = vmatprep.subr.mxu0 0.0
      %1291 = vmatpush1.msra.mxu0 0.0
      %1292 = vmatprep.subr.mxu0 0.0
      %1293 = vmatpush1.msra.mxu0 0.0
      %1294 = vmatprep.subr.mxu0 0.0
      %1295 = vmatpush1.msra.mxu0 0.0
      %1296 = vmatprep.subr.mxu0 0.0
      %1297 = vmatpush1.msra.mxu0 0.0
      %1298 = vmatprep.mubr.f32.mxu0 0.0
      %1299 = vmatmul.mubr.f32.gmra.mrb[0].mxu0 %v492
      %v1300 = vpop.f32.mrb[0].mxu0
      %v1301 = vadd.f32 %v591, %v1300
      %v1302 = vpop.f32.mrb[0].mxu0
      %v1303 = vadd.f32 %v592, %v1302
      %1304 = vdwg.mxu0
      %vm1305 = vcmp.ge.f32.partialorder %v1301, 0.0
      %vm1306 = vcmp.ge.f32.partialorder %v1303, 0.0
      %v1307 = vmul.f32 %v1301, 0.01
      %v1308 = vmul.f32 %v1303, 0.01
      %v1309 = vsel %vm1305, %v1301, %v1307
      %v1310 = vsel %vm1306, %v1303, %v1308
      %v1313 = vcombine.low %v1309, %v1310
      %1315 = vst [vmem:[%s251] sm:$0xff] %v1313
      %p1316 = scmp.lt.s32.totalorder %s17, 1
      %s1317 = scalar_select %p1316, %s17, 1
      %s1318 = smul.addr %s1317, 2
      %s1319 = smul.addr %s1318, 4
      %s1320 = scalar_lea.vmem %s6, %s1319
      // Predicated region
      $region45: #{resblock1_forward.3} parent=43 // pred_check
        %p1321 = pneg %p166
      $region46: #{resblock1_forward.3} parent=43 // pred_check_branch
        %1323 = sbr.rel (%p1321) target = $region48
      $region47: #{resblock1_forward.3} parent=43 // pred_region
        _
      $region48: #{resblock1_forward.3} parent=43 // pred_fallthru
        _
    $region44: #{resblock1_forward.3} parent=5 // pred_fallthru
      _
    %p1324 = scmp.le.s32.totalorder 2, %s12
    // Predicated region
    $region49: #{resblock1_forward.3} parent=5 // pred_check
      %p1325 = pneg %p1324
    $region50: #{resblock1_forward.3} parent=5 // pred_check_branch
      %1327 = sbr.rel (%p1325) target = $region52
    $region51: #{resblock1_forward.3} parent=5 // pred_region
      %s1328 = ssub.s32 %s12, 2
      // Predicated region
      $region53: #{resblock1_forward.3} parent=51 // pred_check
        %p1329 = pneg %p172
      $region54: #{resblock1_forward.3} parent=51 // pred_check_branch
        %1331 = sbr.rel (%p1329) target = $region56
      $region55: #{resblock1_forward.3} parent=51 // pred_region
        %p1332 = scmp.lt.s32.totalorder %s18, 1
        %s1333 = scalar_select %p1332, %s18, 1
        %s1334 = smul.addr %s1333, 2
        %s1335 = smul.addr %s1334, 4
        %s1336 = scalar_lea.vmem %s6, %s1335
      $region56: #{resblock1_forward.3} parent=51 // pred_fallthru
        _
    $region52: #{resblock1_forward.3} parent=5 // pred_fallthru
      _
  $region6: #{resblock1_forward.3} parent=0 // loop_footer
    %s16 = sadd.s32 1, %s12
  $region7: #{resblock1_forward.3} parent=0 // loop_footer_branch
    %11 = sbr.rel target = $region3
  $region8: #{resblock1_forward.3} parent=0 // loop_exit
    _

</llo_original>
